<compile_context>
chip_gen: v5e
topology: v5e:2x2
jax: 0.10.0
libtpu: 0.0.40
codegen_flags: <defaults>
</compile_context>

<pallas_src>
import functools

import jax
import jax.numpy as jnp
from jax import lax
from jax.experimental import pallas as pl
from jax.experimental.pallas import tpu as pltpu


def _round_up(x, m):
    return ((x + m - 1) // m) * m


@functools.lru_cache(maxsize=None)
def _vmem_budget():
    """(tile-footprint budget, scoped vmem_limit_bytes) derived per chip."""
    try:
        cap = int(pltpu.get_tpu_info().vmem_capacity_bytes)
    except Exception:
        cap = 64 * 1024 * 1024  # conservative fallback (v7x size) -- safe everywhere
    tile_budget = min(int(cap * 0.45), 56 * 1024 * 1024)
    vmem_limit = min(int(cap * 0.75), 100 * 1024 * 1024)
    return tile_budget, vmem_limit


def _pick_tile(dim, preferred):
    for t in preferred:
        if t <= dim and dim % t == 0:
            return t
    return dim


# ----------------------------- matmul kernels -------------------------------
# Fused epilogue: bias add, optional exact GELU, optional residual add.
# Fused prologue (single-K path only): LayerNorm of the x block.

_GELU_C = 0.7071067811865476  # 1/sqrt(2)


def _mm_single_kernel(*refs, activation, has_res, has_ln, eps):
    it = iter(refs)
    x_ref = next(it)
    w_ref = next(it)
    b_ref = next(it)
    g_ref = next(it) if has_ln else None
    bt_ref = next(it) if has_ln else None
    r_ref = next(it) if has_res else None
    o_ref = next(it)

    x = x_ref[...]
    if has_ln:
        xf = x.astype(jnp.float32)
        mean = jnp.mean(xf, axis=-1, keepdims=True)
        xc = xf - mean
        var = jnp.mean(xc * xc, axis=-1, keepdims=True)
        xn = xc * lax.rsqrt(var + jnp.float32(eps))
        xn = xn * g_ref[...].astype(jnp.float32) + bt_ref[...].astype(jnp.float32)
        x = xn.astype(w_ref.dtype)
    elif x.dtype != w_ref.dtype:
        x = x.astype(w_ref.dtype)

    y = jnp.dot(x, w_ref[...], preferred_element_type=jnp.float32)
    y = y + b_ref[...].astype(jnp.float32)
    if activation == "gelu":
        # exact GELU (matches torch.nn.GELU default, approximate='none')
        y = 0.5 * y * (1.0 + lax.erf(y * jnp.float32(_GELU_C)))
    if has_res:
        y = y + r_ref[...].astype(jnp.float32)
    o_ref[...] = y.astype(o_ref.dtype)


def _mm_acc_kernel(*refs, activation, has_res):
    if has_res:
        x_ref, w_ref, b_ref, r_ref, o_ref, acc_ref = refs
    else:
        x_ref, w_ref, b_ref, o_ref, acc_ref = refs
        r_ref = None

    @pl.when(pl.program_id(2) == 0)
    def _():
        acc_ref[...] = jnp.zeros_like(acc_ref)

    acc_ref[...] += jnp.dot(x_ref[...], w_ref[...],
                            preferred_element_type=jnp.float32)

    @pl.when(pl.program_id(2) == pl.num_programs(2) - 1)
    def _():
        y = acc_ref[...] + b_ref[...].astype(jnp.float32)
        if activation == "gelu":
            y = 0.5 * y * (1.0 + lax.erf(y * jnp.float32(_GELU_C)))
        if r_ref is not None:
            y = y + r_ref[...].astype(jnp.float32)
        o_ref[...] = y.astype(o_ref.dtype)


def _block_bytes(tm, tn, tk, K, x_bpe, w_bpe, o_bpe, res_bpe, has_ln):
    buf = 2 * (tm * tk * x_bpe + tk * tn * w_bpe + tm * tn * o_bpe)
    buf += 2 * tn * 4                       # bias (1, tn) f32
    if res_bpe:
        buf += 2 * tm * tn * res_bpe
    if has_ln:
        buf += 4 * tk * 4                   # gamma + beta (1, tk) f32
    if tk != K:
        buf += tm * tn * 4                  # f32 accumulator scratch
    return buf


def _select_tiles(M, K, N, x_bpe, w_bpe, o_bpe, res_bpe, has_ln, budget):
    tm_cands = [t for t in (1024, 512, 256, 128, 64, 32, 16)
                if t <= M and M % t == 0] or [M]
    tn_cands = [t for t in (3072, 2304, 2048, 1536, 1024, 768, 512, 384, 256, 128)
                if t <= N and N % t == 0] or [N]
    # prefer full K (single reduction step), fall back to split-K only if needed
    tk_cands = [K] + [t for t in (2048, 1536, 1024, 768, 512, 384, 256, 128)
                      if t < K and K % t == 0]
    # balanced large tiles first
    pairs = sorted(((tm, tn) for tm in tm_cands for tn in tn_cands),
                   key=lambda p: (min(p), p[0] * p[1]), reverse=True)
    for tk in tk_cands:
        for tm, tn in pairs:
            if _block_bytes(tm, tn, tk, K, x_bpe, w_bpe, o_bpe, res_bpe, has_ln) <= budget:
                return tm, tn, tk
    return tm_cands[-1], tn_cands[-1], tk_cands[-1]


def matmul_bias(x, w, b, *, ln=None, residual=None, activation=None, out_dtype=None):
    """y = [LN(x)] @ w + b (,+GELU)(,+residual).  bf16 MXU operands, f32 accumulate."""
    M, K = x.shape
    N = w.shape[1]
    out_dtype = out_dtype or x.dtype
    budget, vmem_limit = _vmem_budget()
    bpe = lambda dt: jnp.dtype(dt).itemsize
    res_bpe = bpe(residual.dtype) if residual is not None else 0

    has_ln = ln is not None
    tm, tn, tk = _select_tiles(M, K, N, bpe(x.dtype), bpe(w.dtype), bpe(out_dtype),
                               res_bpe, has_ln, budget)

    if has_ln and tk != K:
        # LN fusion needs the full K row resident -> fall back to standalone LN.
        gamma, beta, eps = ln
        x = layernorm(x, gamma, beta, eps=eps, out_dtype=w.dtype)
        has_ln = False
        tm, tn, tk = _select_tiles(M, K, N, bpe(x.dtype), bpe(w.dtype), bpe(out_dtype),
                                   res_bpe, False, budget)

    b2 = b.reshape(1, N).astype(jnp.float32)

    if tk == K:
        # single K step: no accumulator, LN/bias/GELU/residual fused around one dot
        grid = (M // tm, N // tn)
        in_specs = [pl.BlockSpec((tm, K), lambda i, j: (i, 0)),
                    pl.BlockSpec((K, tn), lambda i, j: (0, j)),
                    pl.BlockSpec((1, tn), lambda i, j: (0, j))]
        args = [x, w, b2]
        eps = 1e-5
        if has_ln:
            gamma, beta, eps = ln
            in_specs += [pl.BlockSpec((1, K), lambda i, j: (0, 0)),
                         pl.BlockSpec((1, K), lambda i, j: (0, 0))]
            args += [gamma.reshape(1, K).astype(jnp.float32),
                     beta.reshape(1, K).astype(jnp.float32)]
        if residual is not None:
            in_specs.append(pl.BlockSpec((tm, tn), lambda i, j: (i, j)))
            args.append(residual)

        return pl.pallas_call(
            functools.partial(_mm_single_kernel, activation=activation,
                              has_res=residual is not None, has_ln=has_ln, eps=eps),
            out_shape=jax.ShapeDtypeStruct((M, N), out_dtype),
            grid=grid,
            in_specs=in_specs,
            out_specs=pl.BlockSpec((tm, tn), lambda i, j: (i, j)),
            compiler_params=pltpu.CompilerParams(
                dimension_semantics=("parallel", "parallel"),
                vmem_limit_bytes=vmem_limit),
        )(*args)

    # multi-K fallback (only when full-K does not fit in the VMEM budget)
    grid = (M // tm, N // tn, K // tk)
    in_specs = [pl.BlockSpec((tm, tk), lambda i, j, k: (i, k)),
                pl.BlockSpec((tk, tn), lambda i, j, k: (k, j)),
                pl.BlockSpec((1, tn), lambda i, j, k: (0, j))]
    args = [x, w, b2]
    if residual is not None:
        in_specs.append(pl.BlockSpec((tm, tn), lambda i, j, k: (i, j)))
        args.append(residual)

    return pl.pallas_call(
        functools.partial(_mm_acc_kernel, activation=activation,
                          has_res=residual is not None),
        out_shape=jax.ShapeDtypeStruct((M, N), out_dtype),
        grid=grid,
        in_specs=in_specs,
        out_specs=pl.BlockSpec((tm, tn), lambda i, j, k: (i, j)),
        scratch_shapes=[pltpu.VMEM((tm, tn), jnp.float32)],
        compiler_params=pltpu.CompilerParams(
            dimension_semantics=("parallel", "parallel", "arbitrary"),
            vmem_limit_bytes=vmem_limit),
    )(*args)


# ----------------------------- LayerNorm kernel -----------------------------
# Used only for the final CLS LayerNorm (and as a rare multi-K fallback);
# encoder-internal LayerNorms are fused into the consuming matmuls.

def _ln_kernel(x_ref, g_ref, b_ref, o_ref, *, eps):
    x = x_ref[...].astype(jnp.float32)
    mean = jnp.mean(x, axis=-1, keepdims=True)
    xc = x - mean
    var = jnp.mean(xc * xc, axis=-1, keepdims=True)
    y = xc * lax.rsqrt(var + jnp.float32(eps))
    y = y * g_ref[...].astype(jnp.float32) + b_ref[...].astype(jnp.float32)
    o_ref[...] = y.astype(o_ref.dtype)


def layernorm(x, gamma, beta, *, eps=1e-5, out_dtype=None):
    M, D = x.shape
    out_dtype = out_dtype or x.dtype
    _, vmem_limit = _vmem_budget()
    tm = _pick_tile(M, (1024, 512, 256, 128, 64, 32, 16))
    g2 = gamma.reshape(1, D)
    b2 = beta.reshape(1, D)
    return pl.pallas_call(
        functools.partial(_ln_kernel, eps=eps),
        out_shape=jax.ShapeDtypeStruct((M, D), out_dtype),
        grid=(M // tm,),
        in_specs=[
            pl.BlockSpec((tm, D), lambda i: (i, 0)),
            pl.BlockSpec((1, D), lambda i: (0, 0)),
            pl.BlockSpec((1, D), lambda i: (0, 0)),
        ],
        out_specs=pl.BlockSpec((tm, D), lambda i: (i, 0)),
        compiler_params=pltpu.CompilerParams(
            dimension_semantics=("parallel",),
            vmem_limit_bytes=vmem_limit),
    )(x, g2, b2)


# ---------------------------- attention kernel ------------------------------
# One grid step handles one batch element and ALL heads; q/k/v come from one
# contiguous (1, S_pad, 3*inner) block.  The 1/sqrt(dh) scale is folded into
# w_q at parameter-prep time.  Per-head outputs are concatenated so the output
# store is a single lane-dense slab.  Padded keys are masked only when needed.

def _mhsa_kernel(qkv_ref, o_ref, *, H, dh, inner, s_real):
    s_pad = qkv_ref.shape[1]
    need_mask = s_real < s_pad
    if need_mask:
        col = lax.broadcasted_iota(jnp.int32, (s_pad, s_pad), 1)
        mask_bias = jnp.where(col < s_real, jnp.float32(0.0), jnp.float32(-1e30))

    outs = []
    for h in range(H):                              # static unroll over heads
        lo, hi = h * dh, (h + 1) * dh
        q = qkv_ref[0, :, lo:hi]                    # scale already folded into w_q
        k = qkv_ref[0, :, inner + lo:inner + hi]
        v = qkv_ref[0, :, 2 * inner + lo:2 * inner + hi]
        s = lax.dot_general(q, k, (((1,), (1,)), ((), ())),
                            preferred_element_type=jnp.float32)
        if need_mask:
            s = s + mask_bias
        m = jnp.max(s, axis=-1, keepdims=True)
        p = jnp.exp(s - m)
        l = jnp.sum(p, axis=-1, keepdims=True)
        o = jnp.dot(p.astype(v.dtype), v, preferred_element_type=jnp.float32)
        outs.append(o * pl.reciprocal(l, approx=True))

    out = outs[0] if H == 1 else jnp.concatenate(outs, axis=-1)
    o_ref[0, :, :] = out.astype(o_ref.dtype)        # one lane-dense store


def mhsa(qkv, *, B, S_pad, H, dh, s_real, out_dtype):
    """qkv: (B*S_pad, 3*H*dh) -> attention output (B, S_pad, H*dh)."""
    inner = H * dh
    qkv3 = qkv.reshape(B, S_pad, 3 * inner)
    _, vmem_limit = _vmem_budget()
    return pl.pallas_call(
        functools.partial(_mhsa_kernel, H=H, dh=dh, inner=inner, s_real=s_real),
        out_shape=jax.ShapeDtypeStruct((B, S_pad, inner), out_dtype),
        grid=(B,),
        in_specs=[pl.BlockSpec((1, S_pad, 3 * inner), lambda b: (b, 0, 0))],
        out_specs=pl.BlockSpec((1, S_pad, inner), lambda b: (b, 0, 0)),
        compiler_params=pltpu.CompilerParams(
            dimension_semantics=("parallel",),
            vmem_limit_bytes=vmem_limit),
    )(qkv3)


# ------------------------------ model (glue) -------------------------------

def init_params(key, *, img_size, patch_size, in_chans, embed_dim,
                num_layers, num_heads, dim_head, mlp_ratio=4):
    num_patches = (img_size // patch_size) ** 2
    inner = num_heads * dim_head
    hidden = mlp_ratio * embed_dim
    keys = jax.random.split(key, 4 + num_layers)

    def nrm(k, shape, std=0.02):
        return (std * jax.random.normal(k, shape)).astype(jnp.float32)

    # Conv2d(C, D, kernel=patch, stride=patch) weight, folded to matmul layout.
    conv_w = nrm(keys[0], (embed_dim, in_chans, patch_size, patch_size))
    params = {
        "patch_w": conv_w.reshape(embed_dim, -1).T.astype(jnp.bfloat16),  # (C*p*p, D)
        "patch_b": jnp.zeros((embed_dim,), jnp.float32),
        "cls": nrm(keys[1], (1, 1, embed_dim)),
        "pos": nrm(keys[2], (1, num_patches + 1, embed_dim)),
        "ln_g": jnp.ones((embed_dim,), jnp.float32),
        "ln_b": jnp.zeros((embed_dim,), jnp.float32),
        "layers": [],
    }
    scale = 1.0 / (dim_head ** 0.5)
    for i in range(num_layers):
        lk = jax.random.split(keys[4 + i], 6)
        # fold softmax 1/sqrt(dh) scale into the q projection (weight and bias)
        wq = nrm(lk[0], (embed_dim, inner)) * scale
        wk = nrm(lk[1], (embed_dim, inner))
        wv = nrm(lk[2], (embed_dim, inner))
        bq = jnp.zeros((inner,), jnp.float32) * scale
        bk = jnp.zeros((inner,), jnp.float32)
        bv = jnp.zeros((inner,), jnp.float32)
        params["layers"].append({
            "ln1_g": jnp.ones((embed_dim,), jnp.float32),
            "ln1_b": jnp.zeros((embed_dim,), jnp.float32),
            "w_qkv": jnp.concatenate([wq, wk, wv], axis=1).astype(jnp.bfloat16),
            "b_qkv": jnp.concatenate([bq, bk, bv], axis=0),
            "wo": nrm(lk[3], (inner, embed_dim)).astype(jnp.bfloat16),
            "bo": jnp.zeros((embed_dim,), jnp.float32),
            "ln2_g": jnp.ones((embed_dim,), jnp.float32),
            "ln2_b": jnp.zeros((embed_dim,), jnp.float32),
            "w1": nrm(lk[4], (embed_dim, hidden)).astype(jnp.bfloat16),
            "b1": jnp.zeros((hidden,), jnp.float32),
            "w2": nrm(lk[5], (hidden, embed_dim)).astype(jnp.bfloat16),
            "b2": jnp.zeros((embed_dim,), jnp.float32),
        })
    return params


def encoder_block(lp, x_res, *, B, S_pad, s_real, num_heads, dim_head):
    inner = num_heads * dim_head

    # --- pre-LN MHSA: LN fused into QKV matmul, residual fused into out-proj ---
    qkv = matmul_bias(x_res, lp["w_qkv"], lp["b_qkv"],
                      ln=(lp["ln1_g"], lp["ln1_b"], 1e-5), out_dtype=jnp.bfloat16)
    attn = mhsa(qkv, B=B, S_pad=S_pad, H=num_heads, dh=dim_head,
                s_real=s_real, out_dtype=jnp.bfloat16)
    x_res = matmul_bias(attn.reshape(B * S_pad, inner), lp["wo"], lp["bo"],
                        residual=x_res, out_dtype=jnp.float32)

    # --- pre-LN MLP: LN+GELU fused into matmul1, residual fused into matmul2 ---
    h = matmul_bias(x_res, lp["w1"], lp["b1"],
                    ln=(lp["ln2_g"], lp["ln2_b"], 1e-5),
                    activation="gelu", out_dtype=jnp.bfloat16)
    x_res = matmul_bias(h, lp["w2"], lp["b2"],
                        residual=x_res, out_dtype=jnp.float32)
    return x_res


def vit_b32_forward(params, x, *, patch_size, embed_dim, num_heads, dim_head):
    # x is NCHW (B, C, H, W), same as the PyTorch module input.
    B, C, H, W = x.shape
    p = patch_size
    gh, gw = H // p, W // p
    num_patches = gh * gw

    # Patch_Embedding: Conv2d(stride=patch) == non-overlapping unfold + matmul.
    patches = (x.reshape(B, C, gh, p, gw, p)
                .transpose(0, 2, 4, 1, 3, 5)            # (B, gh, gw, C, p, p)
                .reshape(B * num_patches, C * p * p)
                .astype(jnp.bfloat16))
    tok = matmul_bias(patches, params["patch_w"], params["patch_b"],
                      out_dtype=jnp.float32).reshape(B, num_patches, embed_dim)

    # Extra_learnable_Embedding (CLS) + Positional_Embedding.
    cls = jnp.broadcast_to(params["cls"], (B, 1, embed_dim))
    xseq = jnp.concatenate([cls, tok], axis=1) + params["pos"]   # (B, S, D)
    S = num_patches + 1

    # Pad S once so every token tensor is sublane/lane friendly (e.g. 50 -> 64).
    S_pad = _round_up(S, 64) if S > 32 else _round_up(S, 8)
    xseq = jnp.pad(xseq, ((0, 0), (0, S_pad - S), (0, 0)))
    x_res = xseq.reshape(B * S_pad, embed_dim)            # f32 residual stream

    for lp in params["layers"]:
        x_res = encoder_block(lp, x_res, B=B, S_pad=S_pad, s_real=S,
                              num_heads=num_heads, dim_head=dim_head)

    # Final LayerNorm only on the CLS rows (LN is row-wise; identical result).
    cls_rows = x_res.reshape(B, S_pad, embed_dim)[:, 0, :]
    return layernorm(cls_rows, params["ln_g"], params["ln_b"],
                     out_dtype=jnp.float32)               # (B, D)


# --------------------------------- main ------------------------------------

if __name__ == "__main__":
    # Small shapes consistent with the module's forward.
    img_size, patch_size, in_chans = 16, 8, 3
    embed_dim, num_layers, num_heads, dim_head = 32, 2, 2, 16
    batch = 2

    key = jax.random.PRNGKey(0)
    kp, kx = jax.random.split(key)
    params = init_params(kp, img_size=img_size, patch_size=patch_size,
                         in_chans=in_chans, embed_dim=embed_dim,
                         num_layers=num_layers, num_heads=num_heads,
                         dim_head=dim_head)
    x = jax.random.normal(kx, (batch, in_chans, img_size, img_size),
                          dtype=jnp.float32)

    fwd = jax.jit(functools.partial(vit_b32_forward, patch_size=patch_size,
                                    embed_dim=embed_dim, num_heads=num_heads,
                                    dim_head=dim_head))
    cls_out = fwd(params, x)
    jax.block_until_ready(cls_out)
    assert cls_out.shape == (batch, embed_dim)
    assert bool(jnp.all(jnp.isfinite(cls_out)))
    print("KERNEL_OK")
</pallas_src>

<mosaic_0001>
module attributes {stable_mosaic.version = 11 : i64} {
  func.func @_mm_single_kernel(%arg0: i32, %arg1: i32, %arg2: memref<8x192xbf16, #tpu.memory_space<vmem>>, %arg3: memref<192x32xbf16, #tpu.memory_space<vmem>>, %arg4: memref<1x32xf32, #tpu.memory_space<vmem>>, %arg5: memref<8x32xf32, #tpu.memory_space<vmem>>) attributes {dimension_semantics = [#tpu.dimension_semantics<parallel>, #tpu.dimension_semantics<parallel>], iteration_bounds = array<i64: 1, 1>, scalar_prefetch = 0 : i64, scratch_operands = 0 : i64, tpu.core_type = #tpu.core_type<tc>, window_params = [{transform_indices = @transform_0, window_bounds = array<i64: 8, 192>}, {transform_indices = @transform_1, window_bounds = array<i64: 192, 32>}, {transform_indices = @transform_2, window_bounds = array<i64: 1, 32>}, {transform_indices = @transform_3, window_bounds = array<i64: 8, 32>}]} {
    %c0 = arith.constant 0 : index
    %c0_0 = arith.constant 0 : index
    %0 = vector.load %arg2[%c0, %c0_0] : memref<8x192xbf16, #tpu.memory_space<vmem>>, vector<8x192xbf16>
    %c0_1 = arith.constant 0 : index
    %c0_2 = arith.constant 0 : index
    %1 = vector.load %arg3[%c0_1, %c0_2] : memref<192x32xbf16, #tpu.memory_space<vmem>>, vector<192x32xbf16>
    %cst = arith.constant dense<0.000000e+00> : vector<8x32xf32>
    %2 = tpu.matmul %0, %1, %cst {dimension_numbers = #tpu.dot_dimension_numbers<[1], [0], [0], [1], [0, 0, 1, 1], [], []>} : vector<8x192xbf16>, vector<192x32xbf16>, vector<8x32xf32> -> vector<8x32xf32>
    %c0_3 = arith.constant 0 : index
    %c0_4 = arith.constant 0 : index
    %3 = vector.load %arg4[%c0_3, %c0_4] : memref<1x32xf32, #tpu.memory_space<vmem>>, vector<1x32xf32>
    %4 = vector.broadcast %3 : vector<1x32xf32> to vector<8x32xf32>
    %5 = arith.addf %2, %4 : vector<8x32xf32>
    %c0_5 = arith.constant 0 : index
    %c0_6 = arith.constant 0 : index
    %6 = vector.load %arg5[%c0_5, %c0_6] : memref<8x32xf32, #tpu.memory_space<vmem>>, vector<8x32xf32>
    tpu.vector_store %arg5[%c0_5, %c0_6], %5 {strides = array<i32>} : memref<8x32xf32, #tpu.memory_space<vmem>>, vector<8x32xf32>,
    return
  }
  func.func @transform_0(%arg0: i32, %arg1: i32) -> (i32, i32) {
    %c0_i32 = arith.constant 0 : i32
    %c0_i32_0 = arith.constant 0 : i32
    return %arg0, %c0_i32 : i32, i32
  }
  func.func @transform_1(%arg0: i32, %arg1: i32) -> (i32, i32) {
    %c0_i32 = arith.constant 0 : i32
    %c0_i32_0 = arith.constant 0 : i32
    return %c0_i32, %arg1 : i32, i32
  }
  func.func @transform_2(%arg0: i32, %arg1: i32) -> (i32, i32) {
    %c0_i32 = arith.constant 0 : i32
    %c0_i32_0 = arith.constant 0 : i32
    return %c0_i32, %arg1 : i32, i32
  }
  func.func @transform_3(%arg0: i32, %arg1: i32) -> (i32, i32) {
    %c0_i32 = arith.constant 0 : i32
    return %arg0, %arg1 : i32, i32
  }
}

module attributes {stable_mosaic.version = 11 : i64} {
  func.func @_mm_single_kernel(%arg0: i32, %arg1: i32, %arg2: memref<16x32xf32, #tpu.memory_space<vmem>>, %arg3: memref<32x96xbf16, #tpu.memory_space<vmem>>, %arg4: memref<1x96xf32, #tpu.memory_space<vmem>>, %arg5: memref<1x32xf32, #tpu.memory_space<vmem>>, %arg6: memref<1x32xf32, #tpu.memory_space<vmem>>, %arg7: memref<16x96xbf16, #tpu.memory_space<vmem>>) attributes {dimension_semantics = [#tpu.dimension_semantics<parallel>, #tpu.dimension_semantics<parallel>], iteration_bounds = array<i64: 1, 1>, scalar_prefetch = 0 : i64, scratch_operands = 0 : i64, tpu.core_type = #tpu.core_type<tc>, window_params = [{transform_indices = @transform_0, window_bounds = array<i64: 16, 32>}, {transform_indices = @transform_1, window_bounds = array<i64: 32, 96>}, {transform_indices = @transform_2, window_bounds = array<i64: 1, 96>}, {pipeline_mode = #tpu.pipeline_mode<synchronous>, transform_indices = @transform_3, window_bounds = array<i64: 1, 32>}, {pipeline_mode = #tpu.pipeline_mode<synchronous>, transform_indices = @transform_4, window_bounds = array<i64: 1, 32>}, {transform_indices = @transform_5, window_bounds = array<i64: 16, 96>}]} {
    %c0 = arith.constant 0 : index
    %c0_0 = arith.constant 0 : index
    %0 = vector.load %arg2[%c0, %c0_0] : memref<16x32xf32, #tpu.memory_space<vmem>>, vector<16x32xf32>
    %cst = arith.constant dense<0.000000e+00> : vector<16xf32>
    %1 = vector.multi_reduction <add>, %0, %cst [1] : vector<16x32xf32> to vector<16xf32>
    %2 = vector.shape_cast %1 : vector<16xf32> to vector<16x1xf32>
    %cst_1 = arith.constant 3.200000e+01 : f32
    %3 = vector.broadcast %cst_1 : f32 to vector<16x1xf32>
    %4 = arith.divf %2, %3 : vector<16x1xf32>
    %5 = vector.broadcast %4 : vector<16x1xf32> to vector<16x32xf32>
    %6 = arith.subf %0, %5 : vector<16x32xf32>
    %7 = arith.mulf %6, %6 : vector<16x32xf32>
    %cst_2 = arith.constant dense<0.000000e+00> : vector<16xf32>
    %8 = vector.multi_reduction <add>, %7, %cst_2 [1] : vector<16x32xf32> to vector<16xf32>
    %9 = vector.shape_cast %8 : vector<16xf32> to vector<16x1xf32>
    %cst_3 = arith.constant 3.200000e+01 : f32
    %10 = vector.broadcast %cst_3 : f32 to vector<16x1xf32>
    %11 = arith.divf %9, %10 : vector<16x1xf32>
    %cst_4 = arith.constant 9.99999974E-6 : f32
    %12 = vector.broadcast %cst_4 : f32 to vector<16x1xf32>
    %13 = arith.addf %11, %12 : vector<16x1xf32>
    %14 = math.rsqrt %13 : vector<16x1xf32>
    %15 = vector.broadcast %14 : vector<16x1xf32> to vector<16x32xf32>
    %16 = arith.mulf %6, %15 : vector<16x32xf32>
    %c0_5 = arith.constant 0 : index
    %c0_6 = arith.constant 0 : index
    %17 = vector.load %arg5[%c0_5, %c0_6] : memref<1x32xf32, #tpu.memory_space<vmem>>, vector<1x32xf32>
    %18 = vector.broadcast %17 : vector<1x32xf32> to vector<16x32xf32>
    %19 = arith.mulf %16, %18 : vector<16x32xf32>
    %c0_7 = arith.constant 0 : index
    %c0_8 = arith.constant 0 : index
    %20 = vector.load %arg6[%c0_7, %c0_8] : memref<1x32xf32, #tpu.memory_space<vmem>>, vector<1x32xf32>
    %21 = vector.broadcast %20 : vector<1x32xf32> to vector<16x32xf32>
    %22 = arith.addf %19, %21 : vector<16x32xf32>
    %23 = arith.truncf %22 : vector<16x32xf32> to vector<16x32xbf16>
    %c0_9 = arith.constant 0 : index
    %c0_10 = arith.constant 0 : index
    %24 = vector.load %arg3[%c0_9, %c0_10] : memref<32x96xbf16, #tpu.memory_space<vmem>>, vector<32x96xbf16>
    %cst_11 = arith.constant dense<0.000000e+00> : vector<16x96xf32>
    %25 = tpu.matmul %23, %24, %cst_11 {dimension_numbers = #tpu.dot_dimension_numbers<[1], [0], [0], [1], [0, 0, 1, 1], [], []>} : vector<16x32xbf16>, vector<32x96xbf16>, vector<16x96xf32> -> vector<16x96xf32>
    %c0_12 = arith.constant 0 : index
    %c0_13 = arith.constant 0 : index
    %26 = vector.load %arg4[%c0_12, %c0_13] : memref<1x96xf32, #tpu.memory_space<vmem>>, vector<1x96xf32>
    %27 = vector.broadcast %26 : vector<1x96xf32> to vector<16x96xf32>
    %28 = arith.addf %25, %27 : vector<16x96xf32>
    %29 = arith.truncf %28 : vector<16x96xf32> to vector<16x96xbf16>
    %c0_14 = arith.constant 0 : index
    %c0_15 = arith.constant 0 : index
    %30 = vector.load %arg7[%c0_14, %c0_15] : memref<16x96xbf16, #tpu.memory_space<vmem>>, vector<16x96xbf16>
    tpu.vector_store %arg7[%c0_14, %c0_15], %29 {strides = array<i32>} : memref<16x96xbf16, #tpu.memory_space<vmem>>, vector<16x96xbf16>,
    return
  }
  func.func @transform_0(%arg0: i32, %arg1: i32) -> (i32, i32) {
    %c0_i32 = arith.constant 0 : i32
    %c0_i32_0 = arith.constant 0 : i32
    return %arg0, %c0_i32 : i32, i32
  }
  func.func @transform_1(%arg0: i32, %arg1: i32) -> (i32, i32) {
    %c0_i32 = arith.constant 0 : i32
    %c0_i32_0 = arith.constant 0 : i32
    return %c0_i32, %arg1 : i32, i32
  }
  func.func @transform_2(%arg0: i32, %arg1: i32) -> (i32, i32) {
    %c0_i32 = arith.constant 0 : i32
    %c0_i32_0 = arith.constant 0 : i32
    return %c0_i32, %arg1 : i32, i32
  }
  func.func @transform_3(%arg0: i32, %arg1: i32) -> (i32, i32) {
    %c0_i32 = arith.constant 0 : i32
    %c0_i32_0 = arith.constant 0 : i32
    %c0_i32_1 = arith.constant 0 : i32
    return %c0_i32, %c0_i32_0 : i32, i32
  }
  func.func @transform_4(%arg0: i32, %arg1: i32) -> (i32, i32) {
    %c0_i32 = arith.constant 0 : i32
    %c0_i32_0 = arith.constant 0 : i32
    %c0_i32_1 = arith.constant 0 : i32
    return %c0_i32, %c0_i32_0 : i32, i32
  }
  func.func @transform_5(%arg0: i32, %arg1: i32) -> (i32, i32) {
    %c0_i32 = arith.constant 0 : i32
    return %arg0, %arg1 : i32, i32
  }
}

module attributes {stable_mosaic.version = 11 : i64} {
  func.func @_mm_single_kernel(%arg0: i32, %arg1: i32, %arg2: memref<16x32xbf16, #tpu.memory_space<vmem>>, %arg3: memref<32x32xbf16, #tpu.memory_space<vmem>>, %arg4: memref<1x32xf32, #tpu.memory_space<vmem>>, %arg5: memref<16x32xf32, #tpu.memory_space<vmem>>, %arg6: memref<16x32xf32, #tpu.memory_space<vmem>>) attributes {dimension_semantics = [#tpu.dimension_semantics<parallel>, #tpu.dimension_semantics<parallel>], iteration_bounds = array<i64: 1, 1>, scalar_prefetch = 0 : i64, scratch_operands = 0 : i64, tpu.core_type = #tpu.core_type<tc>, window_params = [{transform_indices = @transform_0, window_bounds = array<i64: 16, 32>}, {transform_indices = @transform_1, window_bounds = array<i64: 32, 32>}, {transform_indices = @transform_2, window_bounds = array<i64: 1, 32>}, {transform_indices = @transform_3, window_bounds = array<i64: 16, 32>}, {transform_indices = @transform_4, window_bounds = array<i64: 16, 32>}]} {
    %c0 = arith.constant 0 : index
    %c0_0 = arith.constant 0 : index
    %0 = vector.load %arg2[%c0, %c0_0] : memref<16x32xbf16, #tpu.memory_space<vmem>>, vector<16x32xbf16>
    %c0_1 = arith.constant 0 : index
    %c0_2 = arith.constant 0 : index
    %1 = vector.load %arg3[%c0_1, %c0_2] : memref<32x32xbf16, #tpu.memory_space<vmem>>, vector<32x32xbf16>
    %cst = arith.constant dense<0.000000e+00> : vector<16x32xf32>
    %2 = tpu.matmul %0, %1, %cst {dimension_numbers = #tpu.dot_dimension_numbers<[1], [0], [0], [1], [0, 0, 1, 1], [], []>} : vector<16x32xbf16>, vector<32x32xbf16>, vector<16x32xf32> -> vector<16x32xf32>
    %c0_3 = arith.constant 0 : index
    %c0_4 = arith.constant 0 : index
    %3 = vector.load %arg4[%c0_3, %c0_4] : memref<1x32xf32, #tpu.memory_space<vmem>>, vector<1x32xf32>
    %4 = vector.broadcast %3 : vector<1x32xf32> to vector<16x32xf32>
    %5 = arith.addf %2, %4 : vector<16x32xf32>
    %c0_5 = arith.constant 0 : index
    %c0_6 = arith.constant 0 : index
    %6 = vector.load %arg5[%c0_5, %c0_6] : memref<16x32xf32, #tpu.memory_space<vmem>>, vector<16x32xf32>
    %7 = arith.addf %5, %6 : vector<16x32xf32>
    %c0_7 = arith.constant 0 : index
    %c0_8 = arith.constant 0 : index
    %8 = vector.load %arg6[%c0_7, %c0_8] : memref<16x32xf32, #tpu.memory_space<vmem>>, vector<16x32xf32>
    tpu.vector_store %arg6[%c0_7, %c0_8], %7 {strides = array<i32>} : memref<16x32xf32, #tpu.memory_space<vmem>>, vector<16x32xf32>,
    return
  }
  func.func @transform_0(%arg0: i32, %arg1: i32) -> (i32, i32) {
    %c0_i32 = arith.constant 0 : i32
    %c0_i32_0 = arith.constant 0 : i32
    return %arg0, %c0_i32 : i32, i32
  }
  func.func @transform_1(%arg0: i32, %arg1: i32) -> (i32, i32) {
    %c0_i32 = arith.constant 0 : i32
    %c0_i32_0 = arith.constant 0 : i32
    return %c0_i32, %arg1 : i32, i32
  }
  func.func @transform_2(%arg0: i32, %arg1: i32) -> (i32, i32) {
    %c0_i32 = arith.constant 0 : i32
    %c0_i32_0 = arith.constant 0 : i32
    return %c0_i32, %arg1 : i32, i32
  }
  func.func @transform_3(%arg0: i32, %arg1: i32) -> (i32, i32) {
    %c0_i32 = arith.constant 0 : i32
    return %arg0, %arg1 : i32, i32
  }
  func.func @transform_4(%arg0: i32, %arg1: i32) -> (i32, i32) {
    %c0_i32 = arith.constant 0 : i32
    return %arg0, %arg1 : i32, i32
  }
}

module attributes {stable_mosaic.version = 11 : i64} {
  func.func @_mhsa_kernel(%arg0: i32, %arg1: memref<1x8x96xbf16, #tpu.memory_space<vmem>>, %arg2: memref<1x8x32xbf16, #tpu.memory_space<vmem>>) attributes {dimension_semantics = [#tpu.dimension_semantics<parallel>], iteration_bounds = array<i64: 2>, scalar_prefetch = 0 : i64, scratch_operands = 0 : i64, tpu.core_type = #tpu.core_type<tc>, window_params = [{transform_indices = @transform_0, window_bounds = array<i64: 1, 8, 96>}, {transform_indices = @transform_1, window_bounds = array<i64: 1, 8, 32>}]} {
    %0 = tpu.iota {dimensions = array<i32: 1>} : vector<8x8xi32>
    %c5_i32 = arith.constant 5 : i32
    %1 = vector.broadcast %c5_i32 : i32 to vector<8x8xi32>
    %2 = arith.cmpi slt, %0, %1 : vector<8x8xi32>
    %cst = arith.constant 0.000000e+00 : f32
    %cst_0 = arith.constant -1.000000e+30 : f32
    %3 = vector.broadcast %cst : f32 to vector<8x8xf32>
    %4 = vector.broadcast %cst_0 : f32 to vector<8x8xf32>
    %5 = arith.select %2, %3, %4 : vector<8x8xi1>, vector<8x8xf32>
    %c0 = arith.constant 0 : index
    %c0_1 = arith.constant 0 : index
    %c0_2 = arith.constant 0 : index
    %6 = vector.load %arg1[%c0, %c0_1, %c0_2] : memref<1x8x96xbf16, #tpu.memory_space<vmem>>, vector<1x8x16xbf16>
    %7 = vector.shape_cast %6 : vector<1x8x16xbf16> to vector<8x16xbf16>
    %c0_3 = arith.constant 0 : index
    %c0_4 = arith.constant 0 : index
    %c32 = arith.constant 32 : index
    %8 = vector.load %arg1[%c0_3, %c0_4, %c32] : memref<1x8x96xbf16, #tpu.memory_space<vmem>>, vector<1x8x16xbf16>
    %9 = vector.shape_cast %8 : vector<1x8x16xbf16> to vector<8x16xbf16>
    %c0_5 = arith.constant 0 : index
    %c0_6 = arith.constant 0 : index
    %c64 = arith.constant 64 : index
    %10 = vector.load %arg1[%c0_5, %c0_6, %c64] : memref<1x8x96xbf16, #tpu.memory_space<vmem>>, vector<1x8x16xbf16>
    %11 = vector.shape_cast %10 : vector<1x8x16xbf16> to vector<8x16xbf16>
    %cst_7 = arith.constant dense<0.000000e+00> : vector<8x8xf32>
    %12 = tpu.matmul %7, %9, %cst_7 {dimension_numbers = #tpu.dot_dimension_numbers<[1], [1], [0], [0], [0, 0, 1, 0], [], []>} : vector<8x16xbf16>, vector<8x16xbf16>, vector<8x8xf32> -> vector<8x8xf32>
    %13 = arith.addf %12, %5 : vector<8x8xf32>
    %cst_8 = arith.constant dense<0xFF800000> : vector<8xf32>
    %14 = vector.multi_reduction <maximumf>, %13, %cst_8 [1] : vector<8x8xf32> to vector<8xf32>
    %15 = vector.shape_cast %14 : vector<8xf32> to vector<8x1xf32>
    %16 = vector.broadcast %15 : vector<8x1xf32> to vector<8x8xf32>
    %17 = arith.subf %13, %16 : vector<8x8xf32>
    %18 = math.exp %17 : vector<8x8xf32>
    %cst_9 = arith.constant dense<0.000000e+00> : vector<8xf32>
    %19 = vector.multi_reduction <add>, %18, %cst_9 [1] : vector<8x8xf32> to vector<8xf32>
    %20 = vector.shape_cast %19 : vector<8xf32> to vector<8x1xf32>
    %21 = arith.truncf %18 : vector<8x8xf32> to vector<8x8xbf16>
    %cst_10 = arith.constant dense<0.000000e+00> : vector<8x16xf32>
    %22 = tpu.matmul %21, %11, %cst_10 {dimension_numbers = #tpu.dot_dimension_numbers<[1], [0], [0], [1], [0, 0, 1, 1], [], []>} : vector<8x8xbf16>, vector<8x16xbf16>, vector<8x16xf32> -> vector<8x16xf32>
    %23 = tpu.reciprocal %20 {approx = true} : vector<8x1xf32> -> vector<8x1xf32>
    %24 = vector.broadcast %23 : vector<8x1xf32> to vector<8x16xf32>
    %25 = arith.mulf %22, %24 : vector<8x16xf32>
    %c0_11 = arith.constant 0 : index
    %c0_12 = arith.constant 0 : index
    %c16 = arith.constant 16 : index
    %26 = vector.load %arg1[%c0_11, %c0_12, %c16] : memref<1x8x96xbf16, #tpu.memory_space<vmem>>, vector<1x8x16xbf16>
    %27 = vector.shape_cast %26 : vector<1x8x16xbf16> to vector<8x16xbf16>
    %c0_13 = arith.constant 0 : index
    %c0_14 = arith.constant 0 : index
    %c48 = arith.constant 48 : index
    %28 = vector.load %arg1[%c0_13, %c0_14, %c48] : memref<1x8x96xbf16, #tpu.memory_space<vmem>>, vector<1x8x16xbf16>
    %29 = vector.shape_cast %28 : vector<1x8x16xbf16> to vector<8x16xbf16>
    %c0_15 = arith.constant 0 : index
    %c0_16 = arith.constant 0 : index
    %c80 = arith.constant 80 : index
    %30 = vector.load %arg1[%c0_15, %c0_16, %c80] : memref<1x8x96xbf16, #tpu.memory_space<vmem>>, vector<1x8x16xbf16>
    %31 = vector.shape_cast %30 : vector<1x8x16xbf16> to vector<8x16xbf16>
    %cst_17 = arith.constant dense<0.000000e+00> : vector<8x8xf32>
    %32 = tpu.matmul %27, %29, %cst_17 {dimension_numbers = #tpu.dot_dimension_numbers<[1], [1], [0], [0], [0, 0, 1, 0], [], []>} : vector<8x16xbf16>, vector<8x16xbf16>, vector<8x8xf32> -> vector<8x8xf32>
    %33 = arith.addf %32, %5 : vector<8x8xf32>
    %cst_18 = arith.constant dense<0xFF800000> : vector<8xf32>
    %34 = vector.multi_reduction <maximumf>, %33, %cst_18 [1] : vector<8x8xf32> to vector<8xf32>
    %35 = vector.shape_cast %34 : vector<8xf32> to vector<8x1xf32>
    %36 = vector.broadcast %35 : vector<8x1xf32> to vector<8x8xf32>
    %37 = arith.subf %33, %36 : vector<8x8xf32>
    %38 = math.exp %37 : vector<8x8xf32>
    %cst_19 = arith.constant dense<0.000000e+00> : vector<8xf32>
    %39 = vector.multi_reduction <add>, %38, %cst_19 [1] : vector<8x8xf32> to vector<8xf32>
    %40 = vector.shape_cast %39 : vector<8xf32> to vector<8x1xf32>
    %41 = arith.truncf %38 : vector<8x8xf32> to vector<8x8xbf16>
    %cst_20 = arith.constant dense<0.000000e+00> : vector<8x16xf32>
    %42 = tpu.matmul %41, %31, %cst_20 {dimension_numbers = #tpu.dot_dimension_numbers<[1], [0], [0], [1], [0, 0, 1, 1], [], []>} : vector<8x8xbf16>, vector<8x16xbf16>, vector<8x16xf32> -> vector<8x16xf32>
    %43 = tpu.reciprocal %40 {approx = true} : vector<8x1xf32> -> vector<8x1xf32>
    %44 = vector.broadcast %43 : vector<8x1xf32> to vector<8x16xf32>
    %45 = arith.mulf %42, %44 : vector<8x16xf32>
    %46 = tpu.concatenate %25, %45 in 1 : vector<8x16xf32>, vector<8x16xf32> -> vector<8x32xf32>
    %47 = arith.truncf %46 : vector<8x32xf32> to vector<8x32xbf16>
    %c0_21 = arith.constant 0 : index
    %c0_22 = arith.constant 0 : index
    %c0_23 = arith.constant 0 : index
    %48 = vector.load %arg2[%c0_21, %c0_22, %c0_23] : memref<1x8x32xbf16, #tpu.memory_space<vmem>>, vector<1x8x32xbf16>
    %49 = vector.shape_cast %48 : vector<1x8x32xbf16> to vector<8x32xbf16>
    %50 = vector.shape_cast %47 : vector<8x32xbf16> to vector<1x8x32xbf16>
    tpu.vector_store %arg2[%c0_21, %c0_22, %c0_23], %50 {strides = array<i32>} : memref<1x8x32xbf16, #tpu.memory_space<vmem>>, vector<1x8x32xbf16>,
    return
  }
  func.func @transform_0(%arg0: i32) -> (i32, i32, i32) {
    %c0_i32 = arith.constant 0 : i32
    %c0_i32_0 = arith.constant 0 : i32
    %c0_i32_1 = arith.constant 0 : i32
    return %arg0, %c0_i32, %c0_i32_0 : i32, i32, i32
  }
  func.func @transform_1(%arg0: i32) -> (i32, i32, i32) {
    %c0_i32 = arith.constant 0 : i32
    %c0_i32_0 = arith.constant 0 : i32
    %c0_i32_1 = arith.constant 0 : i32
    return %arg0, %c0_i32, %c0_i32_0 : i32, i32, i32
  }
}

module attributes {stable_mosaic.version = 11 : i64} {
  func.func @_mm_single_kernel(%arg0: i32, %arg1: i32, %arg2: memref<16x128xbf16, #tpu.memory_space<vmem>>, %arg3: memref<128x32xbf16, #tpu.memory_space<vmem>>, %arg4: memref<1x32xf32, #tpu.memory_space<vmem>>, %arg5: memref<16x32xf32, #tpu.memory_space<vmem>>, %arg6: memref<16x32xf32, #tpu.memory_space<vmem>>) attributes {dimension_semantics = [#tpu.dimension_semantics<parallel>, #tpu.dimension_semantics<parallel>], iteration_bounds = array<i64: 1, 1>, scalar_prefetch = 0 : i64, scratch_operands = 0 : i64, tpu.core_type = #tpu.core_type<tc>, window_params = [{transform_indices = @transform_0, window_bounds = array<i64: 16, 128>}, {transform_indices = @transform_1, window_bounds = array<i64: 128, 32>}, {transform_indices = @transform_2, window_bounds = array<i64: 1, 32>}, {transform_indices = @transform_3, window_bounds = array<i64: 16, 32>}, {transform_indices = @transform_4, window_bounds = array<i64: 16, 32>}]} {
    %c0 = arith.constant 0 : index
    %c0_0 = arith.constant 0 : index
    %0 = vector.load %arg2[%c0, %c0_0] : memref<16x128xbf16, #tpu.memory_space<vmem>>, vector<16x128xbf16>
    %c0_1 = arith.constant 0 : index
    %c0_2 = arith.constant 0 : index
    %1 = vector.load %arg3[%c0_1, %c0_2] : memref<128x32xbf16, #tpu.memory_space<vmem>>, vector<128x32xbf16>
    %cst = arith.constant dense<0.000000e+00> : vector<16x32xf32>
    %2 = tpu.matmul %0, %1, %cst {dimension_numbers = #tpu.dot_dimension_numbers<[1], [0], [0], [1], [0, 0, 1, 1], [], []>} : vector<16x128xbf16>, vector<128x32xbf16>, vector<16x32xf32> -> vector<16x32xf32>
    %c0_3 = arith.constant 0 : index
    %c0_4 = arith.constant 0 : index
    %3 = vector.load %arg4[%c0_3, %c0_4] : memref<1x32xf32, #tpu.memory_space<vmem>>, vector<1x32xf32>
    %4 = vector.broadcast %3 : vector<1x32xf32> to vector<16x32xf32>
    %5 = arith.addf %2, %4 : vector<16x32xf32>
    %c0_5 = arith.constant 0 : index
    %c0_6 = arith.constant 0 : index
    %6 = vector.load %arg5[%c0_5, %c0_6] : memref<16x32xf32, #tpu.memory_space<vmem>>, vector<16x32xf32>
    %7 = arith.addf %5, %6 : vector<16x32xf32>
    %c0_7 = arith.constant 0 : index
    %c0_8 = arith.constant 0 : index
    %8 = vector.load %arg6[%c0_7, %c0_8] : memref<16x32xf32, #tpu.memory_space<vmem>>, vector<16x32xf32>
    tpu.vector_store %arg6[%c0_7, %c0_8], %7 {strides = array<i32>} : memref<16x32xf32, #tpu.memory_space<vmem>>, vector<16x32xf32>,
    return
  }
  func.func @transform_0(%arg0: i32, %arg1: i32) -> (i32, i32) {
    %c0_i32 = arith.constant 0 : i32
    %c0_i32_0 = arith.constant 0 : i32
    return %arg0, %c0_i32 : i32, i32
  }
  func.func @transform_1(%arg0: i32, %arg1: i32) -> (i32, i32) {
    %c0_i32 = arith.constant 0 : i32
    %c0_i32_0 = arith.constant 0 : i32
    return %c0_i32, %arg1 : i32, i32
  }
  func.func @transform_2(%arg0: i32, %arg1: i32) -> (i32, i32) {
    %c0_i32 = arith.constant 0 : i32
    %c0_i32_0 = arith.constant 0 : i32
    return %c0_i32, %arg1 : i32, i32
  }
  func.func @transform_3(%arg0: i32, %arg1: i32) -> (i32, i32) {
    %c0_i32 = arith.constant 0 : i32
    return %arg0, %arg1 : i32, i32
  }
  func.func @transform_4(%arg0: i32, %arg1: i32) -> (i32, i32) {
    %c0_i32 = arith.constant 0 : i32
    return %arg0, %arg1 : i32, i32
  }
}

module attributes {stable_mosaic.version = 11 : i64} {
  func.func @_mm_single_kernel(%arg0: i32, %arg1: i32, %arg2: memref<16x32xf32, #tpu.memory_space<vmem>>, %arg3: memref<32x128xbf16, #tpu.memory_space<vmem>>, %arg4: memref<1x128xf32, #tpu.memory_space<vmem>>, %arg5: memref<1x32xf32, #tpu.memory_space<vmem>>, %arg6: memref<1x32xf32, #tpu.memory_space<vmem>>, %arg7: memref<16x128xbf16, #tpu.memory_space<vmem>>) attributes {dimension_semantics = [#tpu.dimension_semantics<parallel>, #tpu.dimension_semantics<parallel>], iteration_bounds = array<i64: 1, 1>, scalar_prefetch = 0 : i64, scratch_operands = 0 : i64, tpu.core_type = #tpu.core_type<tc>, window_params = [{transform_indices = @transform_0, window_bounds = array<i64: 16, 32>}, {transform_indices = @transform_1, window_bounds = array<i64: 32, 128>}, {transform_indices = @transform_2, window_bounds = array<i64: 1, 128>}, {pipeline_mode = #tpu.pipeline_mode<synchronous>, transform_indices = @transform_3, window_bounds = array<i64: 1, 32>}, {pipeline_mode = #tpu.pipeline_mode<synchronous>, transform_indices = @transform_4, window_bounds = array<i64: 1, 32>}, {transform_indices = @transform_5, window_bounds = array<i64: 16, 128>}]} {
    %c0 = arith.constant 0 : index
    %c0_0 = arith.constant 0 : index
    %0 = vector.load %arg2[%c0, %c0_0] : memref<16x32xf32, #tpu.memory_space<vmem>>, vector<16x32xf32>
    %cst = arith.constant dense<0.000000e+00> : vector<16xf32>
    %1 = vector.multi_reduction <add>, %0, %cst [1] : vector<16x32xf32> to vector<16xf32>
    %2 = vector.shape_cast %1 : vector<16xf32> to vector<16x1xf32>
    %cst_1 = arith.constant 3.200000e+01 : f32
    %3 = vector.broadcast %cst_1 : f32 to vector<16x1xf32>
    %4 = arith.divf %2, %3 : vector<16x1xf32>
    %5 = vector.broadcast %4 : vector<16x1xf32> to vector<16x32xf32>
    %6 = arith.subf %0, %5 : vector<16x32xf32>
    %7 = arith.mulf %6, %6 : vector<16x32xf32>
    %cst_2 = arith.constant dense<0.000000e+00> : vector<16xf32>
    %8 = vector.multi_reduction <add>, %7, %cst_2 [1] : vector<16x32xf32> to vector<16xf32>
    %9 = vector.shape_cast %8 : vector<16xf32> to vector<16x1xf32>
    %cst_3 = arith.constant 3.200000e+01 : f32
    %10 = vector.broadcast %cst_3 : f32 to vector<16x1xf32>
    %11 = arith.divf %9, %10 : vector<16x1xf32>
    %cst_4 = arith.constant 9.99999974E-6 : f32
    %12 = vector.broadcast %cst_4 : f32 to vector<16x1xf32>
    %13 = arith.addf %11, %12 : vector<16x1xf32>
    %14 = math.rsqrt %13 : vector<16x1xf32>
    %15 = vector.broadcast %14 : vector<16x1xf32> to vector<16x32xf32>
    %16 = arith.mulf %6, %15 : vector<16x32xf32>
    %c0_5 = arith.constant 0 : index
    %c0_6 = arith.constant 0 : index
    %17 = vector.load %arg5[%c0_5, %c0_6] : memref<1x32xf32, #tpu.memory_space<vmem>>, vector<1x32xf32>
    %18 = vector.broadcast %17 : vector<1x32xf32> to vector<16x32xf32>
    %19 = arith.mulf %16, %18 : vector<16x32xf32>
    %c0_7 = arith.constant 0 : index
    %c0_8 = arith.constant 0 : index
    %20 = vector.load %arg6[%c0_7, %c0_8] : memref<1x32xf32, #tpu.memory_space<vmem>>, vector<1x32xf32>
    %21 = vector.broadcast %20 : vector<1x32xf32> to vector<16x32xf32>
    %22 = arith.addf %19, %21 : vector<16x32xf32>
    %23 = arith.truncf %22 : vector<16x32xf32> to vector<16x32xbf16>
    %c0_9 = arith.constant 0 : index
    %c0_10 = arith.constant 0 : index
    %24 = vector.load %arg3[%c0_9, %c0_10] : memref<32x128xbf16, #tpu.memory_space<vmem>>, vector<32x128xbf16>
    %cst_11 = arith.constant dense<0.000000e+00> : vector<16x128xf32>
    %25 = tpu.matmul %23, %24, %cst_11 {dimension_numbers = #tpu.dot_dimension_numbers<[1], [0], [0], [1], [0, 0, 1, 1], [], []>} : vector<16x32xbf16>, vector<32x128xbf16>, vector<16x128xf32> -> vector<16x128xf32>
    %c0_12 = arith.constant 0 : index
    %c0_13 = arith.constant 0 : index
    %26 = vector.load %arg4[%c0_12, %c0_13] : memref<1x128xf32, #tpu.memory_space<vmem>>, vector<1x128xf32>
    %27 = vector.broadcast %26 : vector<1x128xf32> to vector<16x128xf32>
    %28 = arith.addf %25, %27 : vector<16x128xf32>
    %cst_14 = arith.constant 5.000000e-01 : f32
    %29 = vector.broadcast %cst_14 : f32 to vector<16x128xf32>
    %30 = arith.mulf %29, %28 : vector<16x128xf32>
    %cst_15 = arith.constant 0.707106769 : f32
    %31 = vector.broadcast %cst_15 : f32 to vector<16x128xf32>
    %32 = arith.mulf %28, %31 : vector<16x128xf32>
    %33 = math.erf %32 : vector<16x128xf32>
    %cst_16 = arith.constant 1.000000e+00 : f32
    %34 = vector.broadcast %cst_16 : f32 to vector<16x128xf32>
    %35 = arith.addf %34, %33 : vector<16x128xf32>
    %36 = arith.mulf %30, %35 : vector<16x128xf32>
    %37 = arith.truncf %36 : vector<16x128xf32> to vector<16x128xbf16>
    %c0_17 = arith.constant 0 : index
    %c0_18 = arith.constant 0 : index
    %38 = vector.load %arg7[%c0_17, %c0_18] : memref<16x128xbf16, #tpu.memory_space<vmem>>, vector<16x128xbf16>
    tpu.vector_store %arg7[%c0_17, %c0_18], %37 {strides = array<i32>} : memref<16x128xbf16, #tpu.memory_space<vmem>>, vector<16x128xbf16>,
    return
  }
  func.func @transform_0(%arg0: i32, %arg1: i32) -> (i32, i32) {
    %c0_i32 = arith.constant 0 : i32
    %c0_i32_0 = arith.constant 0 : i32
    return %arg0, %c0_i32 : i32, i32
  }
  func.func @transform_1(%arg0: i32, %arg1: i32) -> (i32, i32) {
    %c0_i32 = arith.constant 0 : i32
    %c0_i32_0 = arith.constant 0 : i32
    return %c0_i32, %arg1 : i32, i32
  }
  func.func @transform_2(%arg0: i32, %arg1: i32) -> (i32, i32) {
    %c0_i32 = arith.constant 0 : i32
    %c0_i32_0 = arith.constant 0 : i32
    return %c0_i32, %arg1 : i32, i32
  }
  func.func @transform_3(%arg0: i32, %arg1: i32) -> (i32, i32) {
    %c0_i32 = arith.constant 0 : i32
    %c0_i32_0 = arith.constant 0 : i32
    %c0_i32_1 = arith.constant 0 : i32
    return %c0_i32, %c0_i32_0 : i32, i32
  }
  func.func @transform_4(%arg0: i32, %arg1: i32) -> (i32, i32) {
    %c0_i32 = arith.constant 0 : i32
    %c0_i32_0 = arith.constant 0 : i32
    %c0_i32_1 = arith.constant 0 : i32
    return %c0_i32, %c0_i32_0 : i32, i32
  }
  func.func @transform_5(%arg0: i32, %arg1: i32) -> (i32, i32) {
    %c0_i32 = arith.constant 0 : i32
    return %arg0, %arg1 : i32, i32
  }
}

module attributes {stable_mosaic.version = 11 : i64} {
  func.func @_ln_kernel(%arg0: i32, %arg1: memref<2x32xf32, #tpu.memory_space<vmem>>, %arg2: memref<1x32xf32, #tpu.memory_space<vmem>>, %arg3: memref<1x32xf32, #tpu.memory_space<vmem>>, %arg4: memref<2x32xf32, #tpu.memory_space<vmem>>) attributes {dimension_semantics = [#tpu.dimension_semantics<parallel>], iteration_bounds = array<i64: 1>, scalar_prefetch = 0 : i64, scratch_operands = 0 : i64, tpu.core_type = #tpu.core_type<tc>, window_params = [{transform_indices = @transform_0, window_bounds = array<i64: 2, 32>}, {pipeline_mode = #tpu.pipeline_mode<synchronous>, transform_indices = @transform_1, window_bounds = array<i64: 1, 32>}, {pipeline_mode = #tpu.pipeline_mode<synchronous>, transform_indices = @transform_2, window_bounds = array<i64: 1, 32>}, {transform_indices = @transform_3, window_bounds = array<i64: 2, 32>}]} {
    %c0 = arith.constant 0 : index
    %c0_0 = arith.constant 0 : index
    %0 = vector.load %arg1[%c0, %c0_0] : memref<2x32xf32, #tpu.memory_space<vmem>>, vector<2x32xf32>
    %cst = arith.constant dense<0.000000e+00> : vector<2xf32>
    %1 = vector.multi_reduction <add>, %0, %cst [1] : vector<2x32xf32> to vector<2xf32>
    %2 = vector.shape_cast %1 : vector<2xf32> to vector<2x1xf32>
    %cst_1 = arith.constant 3.200000e+01 : f32
    %3 = vector.broadcast %cst_1 : f32 to vector<2x1xf32>
    %4 = arith.divf %2, %3 : vector<2x1xf32>
    %5 = vector.broadcast %4 : vector<2x1xf32> to vector<2x32xf32>
    %6 = arith.subf %0, %5 : vector<2x32xf32>
    %7 = arith.mulf %6, %6 : vector<2x32xf32>
    %cst_2 = arith.constant dense<0.000000e+00> : vector<2xf32>
    %8 = vector.multi_reduction <add>, %7, %cst_2 [1] : vector<2x32xf32> to vector<2xf32>
    %9 = vector.shape_cast %8 : vector<2xf32> to vector<2x1xf32>
    %cst_3 = arith.constant 3.200000e+01 : f32
    %10 = vector.broadcast %cst_3 : f32 to vector<2x1xf32>
    %11 = arith.divf %9, %10 : vector<2x1xf32>
    %cst_4 = arith.constant 9.99999974E-6 : f32
    %12 = vector.broadcast %cst_4 : f32 to vector<2x1xf32>
    %13 = arith.addf %11, %12 : vector<2x1xf32>
    %14 = math.rsqrt %13 : vector<2x1xf32>
    %15 = vector.broadcast %14 : vector<2x1xf32> to vector<2x32xf32>
    %16 = arith.mulf %6, %15 : vector<2x32xf32>
    %c0_5 = arith.constant 0 : index
    %c0_6 = arith.constant 0 : index
    %17 = vector.load %arg2[%c0_5, %c0_6] : memref<1x32xf32, #tpu.memory_space<vmem>>, vector<1x32xf32>
    %18 = vector.broadcast %17 : vector<1x32xf32> to vector<2x32xf32>
    %19 = arith.mulf %16, %18 : vector<2x32xf32>
    %c0_7 = arith.constant 0 : index
    %c0_8 = arith.constant 0 : index
    %20 = vector.load %arg3[%c0_7, %c0_8] : memref<1x32xf32, #tpu.memory_space<vmem>>, vector<1x32xf32>
    %21 = vector.broadcast %20 : vector<1x32xf32> to vector<2x32xf32>
    %22 = arith.addf %19, %21 : vector<2x32xf32>
    %c0_9 = arith.constant 0 : index
    %c0_10 = arith.constant 0 : index
    %23 = vector.load %arg4[%c0_9, %c0_10] : memref<2x32xf32, #tpu.memory_space<vmem>>, vector<2x32xf32>
    tpu.vector_store %arg4[%c0_9, %c0_10], %22 {strides = array<i32>} : memref<2x32xf32, #tpu.memory_space<vmem>>, vector<2x32xf32>,
    return
  }
  func.func @transform_0(%arg0: i32) -> (i32, i32) {
    %c0_i32 = arith.constant 0 : i32
    %c0_i32_0 = arith.constant 0 : i32
    return %arg0, %c0_i32 : i32, i32
  }
  func.func @transform_1(%arg0: i32) -> (i32, i32) {
    %c0_i32 = arith.constant 0 : i32
    %c0_i32_0 = arith.constant 0 : i32
    %c0_i32_1 = arith.constant 0 : i32
    return %c0_i32, %c0_i32_0 : i32, i32
  }
  func.func @transform_2(%arg0: i32) -> (i32, i32) {
    %c0_i32 = arith.constant 0 : i32
    %c0_i32_0 = arith.constant 0 : i32
    %c0_i32_1 = arith.constant 0 : i32
    return %c0_i32, %c0_i32_0 : i32, i32
  }
  func.func @transform_3(%arg0: i32) -> (i32, i32) {
    %c0_i32 = arith.constant 0 : i32
    %c0_i32_0 = arith.constant 0 : i32
    return %arg0, %c0_i32 : i32, i32
  }
}

</mosaic_0001>

<llo_original>
// kernel: vit_b32_forward.15
$region0: #{vit_b32_forward.15}
  #allocation0 [shape = 'u32[]', space=smem, size = 0x4, offset = 0x4, fixed_abs, tag = 'smem constant byte address 0x4 - core index']
  #allocation1 [shape = 'u32[72,128]{1,0:T(1,128)}', space=vmem, size = 0x9000, scoped, tag = 'internal scratch']
  %s0 = inlined_call_operand.vmem [shape: bf16[16,32], index: 0, kind: input, shape index: {}]
  %s1 = inlined_call_operand.vmem [shape: bf16[32,32], index: 1, kind: input, shape index: {}]
  %s2 = inlined_call_operand.vmem [shape: f32[1,32], index: 2, kind: input, shape index: {}]
  %s3 = inlined_call_operand.vmem [shape: f32[16,32], index: 3, kind: input, shape index: {}]
  %s4 = inlined_call_operand.vmem [shape: f32[16,32], index: 4, kind: output, shape index: {}]
  %s5 = sld [smem:[#allocation0]]
  $region26: #{vit_b32_forward.15} parent=0
    _
  %s7 = ssub.s32 1, %s5
  %s8 = scalar_select 0, %s7, %s5
  // Predicated region
  $region2: #{vit_b32_forward.15} parent=0 // pred_check
    _
  $region3: #{vit_b32_forward.15} parent=0 // pred_check_branch
    %10 = sbr.rel (0) target = $region5
  $region4: #{vit_b32_forward.15} parent=0 // pred_region
    _
  $region5: #{vit_b32_forward.15} parent=0 // pred_fallthru
    _
  // Predicated region
  $region6: #{vit_b32_forward.15} parent=0 // pred_check
    _
  $region7: #{vit_b32_forward.15} parent=0 // pred_check_branch
    %12 = sbr.rel (0) target = $region9
  $region8: #{vit_b32_forward.15} parent=0 // pred_region
    _
  $region9: #{vit_b32_forward.15} parent=0 // pred_fallthru
    _
  // Predicated region
  $region10: #{vit_b32_forward.15} parent=0 // pred_check
    _
  $region11: #{vit_b32_forward.15} parent=0 // pred_check_branch
    %14 = sbr.rel (0) target = $region13
  $region12: #{vit_b32_forward.15} parent=0 // pred_region
    _
  $region13: #{vit_b32_forward.15} parent=0 // pred_fallthru
    _
  // Predicated region
  $region14: #{vit_b32_forward.15} parent=0 // pred_check
    _
  $region15: #{vit_b32_forward.15} parent=0 // pred_check_branch
    %16 = sbr.rel (0) target = $region17
  $region16: #{vit_b32_forward.15} parent=0 // pred_region
    _
  $region17: #{vit_b32_forward.15} parent=0 // pred_fallthru
    _
  %v18 = vld [vmem:[%s0] sm:$0xf]
  %v19 = vld [vmem:[%s0 + $0x4] sm:$0xf]
  %v20 = vld [vmem:[%s1] sm:$0xf]
  %v21 = vld [vmem:[%s1 + $0x4] sm:$0xf]
  %v22 = vld [vmem:[%s1 + $0x8] sm:$0xf]
  %v23 = vld [vmem:[%s1 + $0xc] sm:$0xf]
  %v24 = vld [vmem:[%s2] sm:$0x1]
  %v26 = vperm.slane %v24, 0
  %v30 = vunpack.c.l.b16 %v18
  %v31 = vunpack.c.l.b16 %v19
  %v32 = vpack.c.b16 %v31, %v30
  %v37 = vunpack.c.l.b16 %v20
  %v38 = vunpack.c.l.b16 %v21
  %v39 = vunpack.c.l.b16 %v22
  %v40 = vunpack.c.l.b16 %v23
  %v41 = vpack.c.b16 %v38, %v37
  %v42 = vpack.c.b16 %v40, %v39
  %vm45 = vcmask 261120
  %v47 = vsel %vm45, %v32, 0
  %49 = vmatpush.bf16.msra.mxu0 0
  %50 = vmatpush.bf16.msra.mxu0 0
  %51 = vmatpush.bf16.msra.mxu0 0
  %52 = vmatpush.bf16.msra.mxu0 0
  %53 = vmatpush.bf16.msra.mxu0 0
  %54 = vmatpush.bf16.msra.mxu0 0
  %55 = vmatpush.bf16.msra.mxu0 %v42
  %56 = vmatpush.bf16.msra.mxu0 %v41
  %57 = vmatmul.bf16.gmra.mxu0 %v47
  %v58 = vpop.f32.mrf.mxu0
  %v59 = vadd.f32 %v26, %v58
  %v60 = vpop.f32.mrf.mxu0
  %v61 = vadd.f32 %v26, %v60
  %62 = vdwg.mxu0
  %v63 = vld [vmem:[%s3] sm:$0xff]
  %v64 = vld [vmem:[%s3 + $0x8] sm:$0xff]
  %v65 = vadd.f32 %v59, %v63
  %v66 = vadd.f32 %v61, %v64
  %67 = vst.msk [vmem:[%s4] sm:$0xff] %vm45, %v65
  %68 = vst.msk [vmem:[%s4 + $0x8] sm:$0xff] %vm45, %v66
  // Predicated region
  $region18: #{vit_b32_forward.15} parent=0 // pred_check
    _
  $region19: #{vit_b32_forward.15} parent=0 // pred_check_branch
    %70 = sbr.rel (0) target = $region21
  $region20: #{vit_b32_forward.15} parent=0 // pred_region
    _
  $region21: #{vit_b32_forward.15} parent=0 // pred_fallthru
    _
  // Predicated region
  $region22: #{vit_b32_forward.15} parent=0 // pred_check
    _
  $region23: #{vit_b32_forward.15} parent=0 // pred_check_branch
    %72 = sbr.rel (0) target = $region25
  $region24: #{vit_b32_forward.15} parent=0 // pred_region
    _
  $region25: #{vit_b32_forward.15} parent=0 // pred_fallthru
    _

// kernel: vit_b32_forward.13
$region0: #{vit_b32_forward.13}
  #allocation0 [shape = 'u32[]', space=smem, size = 0x4, offset = 0x4, fixed_abs, tag = 'smem constant byte address 0x4 - core index']
  #allocation1 [shape = 'u32[72,128]{1,0:T(1,128)}', space=vmem, size = 0x9000, scoped, tag = 'internal scratch']
  %s0 = inlined_call_operand.vmem [shape: f32[16,32], index: 0, kind: input, shape index: {}]
  %s1 = inlined_call_operand.vmem [shape: bf16[32,96], index: 1, kind: input, shape index: {}]
  %s2 = inlined_call_operand.vmem [shape: f32[1,96], index: 2, kind: input, shape index: {}]
  %s3 = inlined_call_operand.vmem [shape: f32[1,32], index: 3, kind: input, shape index: {}]
  %s4 = inlined_call_operand.vmem [shape: f32[1,32], index: 4, kind: input, shape index: {}]
  %s5 = inlined_call_operand.vmem [shape: bf16[16,96], index: 5, kind: output, shape index: {}]
  %s6 = sld [smem:[#allocation0]]
  $region30: #{vit_b32_forward.13} parent=0
    _
  %s8 = ssub.s32 1, %s6
  %s9 = scalar_select 0, %s8, %s6
  // Predicated region
  $region2: #{vit_b32_forward.13} parent=0 // pred_check
    _
  $region3: #{vit_b32_forward.13} parent=0 // pred_check_branch
    %11 = sbr.rel (0) target = $region5
  $region4: #{vit_b32_forward.13} parent=0 // pred_region
    _
  $region5: #{vit_b32_forward.13} parent=0 // pred_fallthru
    _
  // Predicated region
  $region6: #{vit_b32_forward.13} parent=0 // pred_check
    _
  $region7: #{vit_b32_forward.13} parent=0 // pred_check_branch
    %13 = sbr.rel (0) target = $region9
  $region8: #{vit_b32_forward.13} parent=0 // pred_region
    _
  $region9: #{vit_b32_forward.13} parent=0 // pred_fallthru
    _
  // Predicated region
  $region10: #{vit_b32_forward.13} parent=0 // pred_check
    _
  $region11: #{vit_b32_forward.13} parent=0 // pred_check_branch
    %15 = sbr.rel (0) target = $region13
  $region12: #{vit_b32_forward.13} parent=0 // pred_region
    _
  $region13: #{vit_b32_forward.13} parent=0 // pred_fallthru
    _
  // Predicated region
  $region14: #{vit_b32_forward.13} parent=0 // pred_check
    _
  $region15: #{vit_b32_forward.13} parent=0 // pred_check_branch
    %17 = sbr.rel (0) target = $region17
  $region16: #{vit_b32_forward.13} parent=0 // pred_region
    _
  $region17: #{vit_b32_forward.13} parent=0 // pred_fallthru
    _
  // Predicated region
  $region18: #{vit_b32_forward.13} parent=0 // pred_check
    _
  $region19: #{vit_b32_forward.13} parent=0 // pred_check_branch
    %19 = sbr.rel (0) target = $region21
  $region20: #{vit_b32_forward.13} parent=0 // pred_region
    _
  $region21: #{vit_b32_forward.13} parent=0 // pred_fallthru
    _
  %v21 = vld [vmem:[%s0] sm:$0xff]
  %v22 = vld [vmem:[%s0 + $0x8] sm:$0xff]
  %vm23 = vcmask 261120
  %v24 = vsel %vm23, %v21, 0.0
  %25 = vadd.xlane.f32.xlu0 %v24
  %v26 = vpop.xlane.xlu0 %25
  %v27 = vsel %vm23, %v22, 0.0
  %28 = vadd.xlane.f32.xlu0 %v27
  %v29 = vpop.xlane.xlu0 %28
  %v30 = vrcp.pop 32.0
  %v31 = vmul.f32 32.0, %v30
  %v32 = vsub.f32 1.0, %v31
  %v33 = vmul.f32 %v30, %v32
  %v34 = vadd.f32 %v30, %v33
  %vm35 = vweird.f32 %v30
  %v36 = vsel %vm35, %v30, %v34
  %v37 = vmul.f32 %v26, %v36
  %v38 = vmul.f32 %v29, %v36
  %v39 = vsub.f32 %v21, %v37
  %v40 = vsub.f32 %v22, %v38
  %v41 = vmul.f32 %v39, %v39
  %v42 = vmul.f32 %v40, %v40
  %v43 = vsel %vm23, %v41, 0.0
  %44 = vadd.xlane.f32.xlu0 %v43
  %v45 = vpop.xlane.xlu0 %44
  %v46 = vsel %vm23, %v42, 0.0
  %47 = vadd.xlane.f32.xlu0 %v46
  %v48 = vpop.xlane.xlu0 %47
  %v49 = vmul.f32 %v45, %v36
  %v50 = vmul.f32 %v48, %v36
  %v51 = vadd.f32 %v49, 1e-05
  %v52 = vadd.f32 %v50, 1e-05
  %v53 = vrsqrt.pop %v51
  %v54 = vmul.f32 %v53, %v51
  %v55 = vmul.f32 %v54, %v53
  %v56 = vmul.f32 0.5, %v55
  %v57 = vsub.f32 1.5, %v56
  %v58 = vmul.f32 %v53, %v57
  %vm59 = vweird.f32 %v51
  %vm60 = vweird.f32 %v53
  %vm61 = vmor %vm59, %vm60
  %v62 = vsel %vm61, %v53, %v58
  %v63 = vrsqrt.pop %v52
  %v64 = vmul.f32 %v63, %v52
  %v65 = vmul.f32 %v64, %v63
  %v66 = vmul.f32 0.5, %v65
  %v67 = vsub.f32 1.5, %v66
  %v68 = vmul.f32 %v63, %v67
  %vm69 = vweird.f32 %v52
  %vm70 = vweird.f32 %v63
  %vm71 = vmor %vm69, %vm70
  %v72 = vsel %vm71, %v63, %v68
  %v73 = vmul.f32 %v39, %v62
  %v74 = vmul.f32 %v40, %v72
  %v75 = vld [vmem:[%s3] sm:$0x1]
  %v77 = vperm.slane %v75, 0
  %v79 = vmul.f32 %v73, %v77
  %v80 = vmul.f32 %v74, %v77
  %v81 = vld [vmem:[%s4] sm:$0x1]
  %v83 = vperm.slane %v81, 0
  %v85 = vadd.f32 %v79, %v83
  %v86 = vadd.f32 %v80, %v83
  %v87 = vpack.c.bf16 %v86, %v85
  %v88 = vld [vmem:[%s1] sm:$0xf]
  %v89 = vld [vmem:[%s1 + $0x4] sm:$0xf]
  %v90 = vld [vmem:[%s1 + $0x8] sm:$0xf]
  %v91 = vld [vmem:[%s1 + $0xc] sm:$0xf]
  %v92 = vld [vmem:[%s2] sm:$0x1]
  %v94 = vperm.slane %v92, 0
  %v100 = vunpack.c.l.b16 %v88
  %v101 = vunpack.c.l.b16 %v89
  %v102 = vunpack.c.l.b16 %v90
  %v103 = vunpack.c.l.b16 %v91
  %v104 = vpack.c.b16 %v101, %v100
  %v105 = vpack.c.b16 %v103, %v102
  %v109 = vsel %vm23, %v87, 0
  %111 = vmatpush.bf16.msra.mxu0 0
  %112 = vmatpush.bf16.msra.mxu0 0
  %113 = vmatpush.bf16.msra.mxu0 0
  %114 = vmatpush.bf16.msra.mxu0 0
  %115 = vmatpush.bf16.msra.mxu0 0
  %116 = vmatpush.bf16.msra.mxu0 0
  %117 = vmatpush.bf16.msra.mxu0 %v105
  %118 = vmatpush.bf16.msra.mxu0 %v104
  %119 = vmatmul.bf16.gmra.mxu0 %v109
  %v120 = vpop.f32.mrf.mxu0
  %v121 = vadd.f32 %v94, %v120
  %v122 = vpop.f32.mrf.mxu0
  %v123 = vadd.f32 %v94, %v122
  %124 = vdwg.mxu0
  %v125 = vpack.c.bf16 %v121, %v121
  %v126 = vpack.c.bf16 %v123, %v123
  %vm127 = vcmask 781312
  %128 = vst.msk [vmem:[%s5] sm:$0xf] %vm127, %v125
  %129 = vst.msk [vmem:[%s5 + $0x4] sm:$0xf] %vm127, %v126
  // Predicated region
  $region22: #{vit_b32_forward.13} parent=0 // pred_check
    _
  $region23: #{vit_b32_forward.13} parent=0 // pred_check_branch
    %131 = sbr.rel (0) target = $region25
  $region24: #{vit_b32_forward.13} parent=0 // pred_region
    _
  $region25: #{vit_b32_forward.13} parent=0 // pred_fallthru
    _
  // Predicated region
  $region26: #{vit_b32_forward.13} parent=0 // pred_check
    _
  $region27: #{vit_b32_forward.13} parent=0 // pred_check_branch
    %133 = sbr.rel (0) target = $region29
  $region28: #{vit_b32_forward.13} parent=0 // pred_region
    _
  $region29: #{vit_b32_forward.13} parent=0 // pred_fallthru
    _

// kernel: vit_b32_forward.12
$region0: #{vit_b32_forward.12}
  #allocation0 [shape = 'u32[]', space=smem, size = 0x4, offset = 0x4, fixed_abs, tag = 'smem constant byte address 0x4 - core index']
  #allocation1 [shape = 'u32[72,128]{1,0:T(1,128)}', space=vmem, size = 0x9000, scoped, tag = 'internal scratch']
  %s0 = inlined_call_operand.vmem [shape: bf16[8,192], index: 0, kind: input, shape index: {}]
  %s1 = inlined_call_operand.vmem [shape: bf16[192,32], index: 1, kind: input, shape index: {}]
  %s2 = inlined_call_operand.vmem [shape: f32[1,32], index: 2, kind: input, shape index: {}]
  %s3 = inlined_call_operand.vmem [shape: f32[8,32], index: 3, kind: output, shape index: {}]
  %s4 = sld [smem:[#allocation0]]
  $region22: #{vit_b32_forward.12} parent=0
    _
  %s6 = ssub.s32 1, %s4
  %s7 = scalar_select 0, %s6, %s4
  // Predicated region
  $region2: #{vit_b32_forward.12} parent=0 // pred_check
    _
  $region3: #{vit_b32_forward.12} parent=0 // pred_check_branch
    %9 = sbr.rel (0) target = $region5
  $region4: #{vit_b32_forward.12} parent=0 // pred_region
    _
  $region5: #{vit_b32_forward.12} parent=0 // pred_fallthru
    _
  // Predicated region
  $region6: #{vit_b32_forward.12} parent=0 // pred_check
    _
  $region7: #{vit_b32_forward.12} parent=0 // pred_check_branch
    %11 = sbr.rel (0) target = $region9
  $region8: #{vit_b32_forward.12} parent=0 // pred_region
    _
  $region9: #{vit_b32_forward.12} parent=0 // pred_fallthru
    _
  // Predicated region
  $region10: #{vit_b32_forward.12} parent=0 // pred_check
    _
  $region11: #{vit_b32_forward.12} parent=0 // pred_check_branch
    %13 = sbr.rel (0) target = $region13
  $region12: #{vit_b32_forward.12} parent=0 // pred_region
    _
  $region13: #{vit_b32_forward.12} parent=0 // pred_fallthru
    _
  %v15 = vld [vmem:[%s0] sm:$0xff]
  %v16 = vld [vmem:[%s1] sm:$0xf]
  %v17 = vld [vmem:[%s1 + $0x4] sm:$0xf]
  %v18 = vld [vmem:[%s1 + $0x8] sm:$0xf]
  %v19 = vld [vmem:[%s1 + $0xc] sm:$0xf]
  %v20 = vld [vmem:[%s1 + $0x10] sm:$0xf]
  %v21 = vld [vmem:[%s1 + $0x14] sm:$0xf]
  %v22 = vld [vmem:[%s1 + $0x18] sm:$0xf]
  %v23 = vld [vmem:[%s1 + $0x1c] sm:$0xf]
  %v24 = vld [vmem:[%s1 + $0x20] sm:$0xf]
  %v25 = vld [vmem:[%s1 + $0x24] sm:$0xf]
  %v26 = vld [vmem:[%s1 + $0x28] sm:$0xf]
  %v27 = vld [vmem:[%s1 + $0x2c] sm:$0xf]
  %v28 = vld [vmem:[%s1 + $0x30] sm:$0xf]
  %v29 = vld [vmem:[%s1 + $0x34] sm:$0xf]
  %v30 = vld [vmem:[%s1 + $0x38] sm:$0xf]
  %v31 = vld [vmem:[%s1 + $0x3c] sm:$0xf]
  %v32 = vld [vmem:[%s1 + $0x40] sm:$0xf]
  %v33 = vld [vmem:[%s1 + $0x44] sm:$0xf]
  %v34 = vld [vmem:[%s1 + $0x48] sm:$0xf]
  %v35 = vld [vmem:[%s1 + $0x4c] sm:$0xf]
  %v36 = vld [vmem:[%s1 + $0x50] sm:$0xf]
  %v37 = vld [vmem:[%s1 + $0x54] sm:$0xf]
  %v38 = vld [vmem:[%s1 + $0x58] sm:$0xf]
  %v39 = vld [vmem:[%s1 + $0x5c] sm:$0xf]
  %v40 = vld [vmem:[%s2] sm:$0x1]
  %v42 = vperm.slane %v40, 0
  %v45 = vunpack.c.l.b16 %v15
  %v46 = vunpack.c.h.b16 %v15
  %v47 = vpack.c.b16 %v45, %v45
  %v48 = vpack.c.b16 %v46, %v46
  %v74 = vunpack.c.l.b16 %v16
  %v75 = vunpack.c.l.b16 %v17
  %v76 = vunpack.c.l.b16 %v18
  %v77 = vunpack.c.l.b16 %v19
  %v78 = vunpack.c.l.b16 %v20
  %v79 = vunpack.c.l.b16 %v21
  %v80 = vunpack.c.l.b16 %v22
  %v81 = vunpack.c.l.b16 %v23
  %v82 = vunpack.c.l.b16 %v24
  %v83 = vunpack.c.l.b16 %v25
  %v84 = vunpack.c.l.b16 %v26
  %v85 = vunpack.c.l.b16 %v27
  %v86 = vunpack.c.l.b16 %v28
  %v87 = vunpack.c.l.b16 %v29
  %v88 = vunpack.c.l.b16 %v30
  %v89 = vunpack.c.l.b16 %v31
  %v90 = vunpack.c.l.b16 %v32
  %v91 = vunpack.c.l.b16 %v33
  %v92 = vunpack.c.l.b16 %v34
  %v93 = vunpack.c.l.b16 %v35
  %v94 = vunpack.c.l.b16 %v36
  %v95 = vunpack.c.l.b16 %v37
  %v96 = vunpack.c.l.b16 %v38
  %v97 = vunpack.c.l.b16 %v39
  %v98 = vpack.c.b16 %v75, %v74
  %v99 = vpack.c.b16 %v77, %v76
  %v100 = vpack.c.b16 %v79, %v78
  %v101 = vpack.c.b16 %v81, %v80
  %v102 = vpack.c.b16 %v83, %v82
  %v103 = vpack.c.b16 %v85, %v84
  %v104 = vpack.c.b16 %v87, %v86
  %v105 = vpack.c.b16 %v89, %v88
  %v106 = vpack.c.b16 %v91, %v90
  %v107 = vpack.c.b16 %v93, %v92
  %v108 = vpack.c.b16 %v95, %v94
  %v109 = vpack.c.b16 %v97, %v96
  %vm122 = vcmask 523264
  %v124 = vsel %vm122, %v48, 0
  %126 = vmatpush.bf16.msra.mxu0 %v105
  %127 = vmatpush.bf16.msra.mxu0 %v104
  %128 = vmatpush.bf16.msra.mxu0 %v103
  %129 = vmatpush.bf16.msra.mxu0 %v102
  %130 = vmatpush.bf16.msra.mxu0 %v101
  %131 = vmatpush.bf16.msra.mxu0 %v100
  %132 = vmatpush.bf16.msra.mxu0 %v99
  %133 = vmatpush.bf16.msra.mxu0 %v98
  %134 = vmatmul.bf16.gmra.mxu0 %v47
  %v135 = vpop.f32.mrf.mxu0
  %v136 = vadd.f32 %v42, %v135
  %v137 = vpop.f32.mrf.mxu0
  %138 = vdwg.mxu0
  %139 = vmatpush.bf16.msra.mxu0 0
  %140 = vmatpush.bf16.msra.mxu0 0
  %141 = vmatpush.bf16.msra.mxu0 0
  %142 = vmatpush.bf16.msra.mxu0 0
  %143 = vmatpush.bf16.msra.mxu0 %v109
  %144 = vmatpush.bf16.msra.mxu0 %v108
  %145 = vmatpush.bf16.msra.mxu0 %v107
  %146 = vmatpush.bf16.msra.mxu0 %v106
  %147 = vmatmul.bf16.gmra.mxu0 %v124
  %v148 = vpop.f32.mrf.mxu0
  %v149 = vadd.f32 %v136, %v148
  %v150 = vpop.f32.mrf.mxu0
  %151 = vdwg.mxu0
  %vm152 = vcmask 261120
  %153 = vst.msk [vmem:[%s3] sm:$0xff] %vm152, %v149
  // Predicated region
  $region14: #{vit_b32_forward.12} parent=0 // pred_check
    _
  $region15: #{vit_b32_forward.12} parent=0 // pred_check_branch
    %155 = sbr.rel (0) target = $region17
  $region16: #{vit_b32_forward.12} parent=0 // pred_region
    _
  $region17: #{vit_b32_forward.12} parent=0 // pred_fallthru
    _
  // Predicated region
  $region18: #{vit_b32_forward.12} parent=0 // pred_check
    _
  $region19: #{vit_b32_forward.12} parent=0 // pred_check_branch
    %157 = sbr.rel (0) target = $region21
  $region20: #{vit_b32_forward.12} parent=0 // pred_region
    _
  $region21: #{vit_b32_forward.12} parent=0 // pred_fallthru
    _

// kernel: vit_b32_forward.14
$region0: #{vit_b32_forward.14}
  #allocation0 [shape = 'u32[]', space=smem, size = 0x4, offset = 0x4, fixed_abs, tag = 'smem constant byte address 0x4 - core index']
  #allocation1 [shape = 'u32[72,128]{1,0:T(1,128)}', space=vmem, size = 0x9000, scoped, tag = 'internal scratch']
  %s0 = inlined_call_operand.vmem [shape: bf16[2,8,96], index: 0, kind: input, shape index: {}]
  %s1 = inlined_call_operand.vmem [shape: bf16[2,8,32], index: 1, kind: output, shape index: {}]
  %s2 = sld [smem:[#allocation0]]
  $region37: #{vit_b32_forward.14} parent=0
    _
  %s4 = ssub.s32 1, %s2
  %s5 = scalar_select 0, %s4, %s2
  loop: start=0, step=1, limit=4
  $region2: #{vit_b32_forward.14} parent=0 // loop_pre_header
    _
  $region3: #{vit_b32_forward.14} parent=0 // loop_header
    %s7 = sphi 0, %s11
    %p8 = scmp.ge.s32.totalorder %s7, 4
    %s17 = sphi 0, %s19
    %s20 = sphi 0, %s17
    %s21 = sphi 0, %s20
    %s37 = sphi 0, %s21
    %s43 = sphi 0, %s45
    %s46 = sphi 0, %s43
    %s47 = sphi 0, %s46
    %s63 = sphi 0, %s47
  $region4: #{vit_b32_forward.14} parent=0 // loop_header_branch
    %10 = sbr.rel (%p8) target = $region8
  $region5: #{vit_b32_forward.14} parent=0 // loop_body
    %s12 = ssub.s32 %s7, 1
    %s13 = ssub.s32 %s7, 2
    %s14 = sadd.s32 %s7, 1
    %s15 = ssub.s32 %s7, %s14
    %p16 = scmp.eq.s32.totalorder %s15, 0
    %s18 = sadd.s32 %s17, 1
    %s19 = scalar_select %p16, %s17, %s18
    %p22 = pneg %p16
    %p23 = scmp.eq.s32.totalorder %s7, 1
    %p24 = por %p22, %p23
    %p25 = scmp.ne.s32.totalorder %s17, %s20
    %p26 = scmp.eq.s32.totalorder %s7, 0
    %p27 = por %p25, %p26
    %p28 = scmp.ne.s32.totalorder %s17, %s20
    %p29 = scmp.eq.s32.totalorder %s12, 1
    %p30 = por %p28, %p29
    %p31 = scmp.ne.s32.totalorder %s20, %s21
    %p32 = scmp.eq.s32.totalorder %s12, 0
    %p33 = por %p31, %p32
    %p34 = scmp.ne.s32.totalorder %s20, %s21
    %p35 = scmp.eq.s32.totalorder %s13, 1
    %p36 = por %p34, %p35
    %p38 = scmp.ne.s32.totalorder %s21, %s37
    %p39 = scmp.eq.s32.totalorder %s13, 0
    %p40 = por %p38, %p39
    %s41 = ssub.s32 %s7, %s14
    %p42 = scmp.eq.s32.totalorder %s41, 0
    %s44 = sadd.s32 %s43, 1
    %s45 = scalar_select %p42, %s43, %s44
    %p48 = pneg %p42
    %p49 = scmp.eq.s32.totalorder %s7, 1
    %p50 = por %p48, %p49
    %p51 = scmp.ne.s32.totalorder %s43, %s46
    %p52 = scmp.eq.s32.totalorder %s7, 0
    %p53 = por %p51, %p52
    %p54 = scmp.ne.s32.totalorder %s43, %s46
    %p55 = scmp.eq.s32.totalorder %s12, 1
    %p56 = por %p54, %p55
    %p57 = scmp.ne.s32.totalorder %s46, %s47
    %p58 = scmp.eq.s32.totalorder %s12, 0
    %p59 = por %p57, %p58
    %p60 = scmp.ne.s32.totalorder %s46, %s47
    %p61 = scmp.eq.s32.totalorder %s13, 1
    %p62 = por %p60, %p61
    %p64 = scmp.ne.s32.totalorder %s47, %s63
    %p65 = scmp.eq.s32.totalorder %s13, 0
    %p66 = por %p64, %p65
    %p67 = scmp.le.s32.totalorder 1, %s7
    %p68 = scmp.lt.s32.totalorder %s7, 3
    %p69 = pnand %p67, %p68
    %p70 = pneg %p69
    // Predicated region
    $region9: #{vit_b32_forward.14} parent=5 // pred_check
      _
    $region10: #{vit_b32_forward.14} parent=5 // pred_check_branch
      %72 = sbr.rel (%p69) target = $region12
    $region11: #{vit_b32_forward.14} parent=5 // pred_region
      %s73 = ssub.s32 %s7, 1
    $region12: #{vit_b32_forward.14} parent=5 // pred_fallthru
      _
    %p74 = scmp.lt.s32.totalorder %s7, 2
    // Predicated region
    $region13: #{vit_b32_forward.14} parent=5 // pred_check
      %p75 = pneg %p74
    $region14: #{vit_b32_forward.14} parent=5 // pred_check_branch
      %77 = sbr.rel (%p75) target = $region16
    $region15: #{vit_b32_forward.14} parent=5 // pred_region
      // Predicated region
      $region17: #{vit_b32_forward.14} parent=15 // pred_check
        %p78 = pneg %p27
      $region18: #{vit_b32_forward.14} parent=15 // pred_check_branch
        %80 = sbr.rel (%p78) target = $region20
      $region19: #{vit_b32_forward.14} parent=15 // pred_region
        %p81 = scmp.lt.s32.totalorder %s7, 1
        %s82 = scalar_select %p81, %s7, 1
        %s83 = smul.addr %s82, 4
        %s84 = scalar_lea.vmem %s0, %s83
      $region20: #{vit_b32_forward.14} parent=15 // pred_fallthru
        _
    $region16: #{vit_b32_forward.14} parent=5 // pred_fallthru
      _
    %p85 = scmp.le.s32.totalorder 1, %s7
    %p86 = scmp.lt.s32.totalorder %s7, 3
    %p87 = pnand %p85, %p86
    %p88 = pneg %p87
    // Predicated region
    $region21: #{vit_b32_forward.14} parent=5 // pred_check
      _
    $region22: #{vit_b32_forward.14} parent=5 // pred_check_branch
      %90 = sbr.rel (%p87) target = $region24
    $region23: #{vit_b32_forward.14} parent=5 // pred_region
      %s91 = ssub.s32 %s7, 1
      %p92 = scmp.lt.s32.totalorder %s12, 1
      %s93 = scalar_select %p92, %s12, 1
      %s94 = smul.addr %s93, 4
      %s95 = scalar_lea.vmem %s0, %s94
      %p96 = pneg %p33
      %p97 = pneg %p30
      %p98 = pneg %p59
      %p99 = pneg %p56
      %p100 = scmp.lt.s32.totalorder %s12, 1
      %s101 = scalar_select %p100, %s12, 1
      %s102 = smul.addr %s101, 4
      %s103 = scalar_lea.vmem %s1, %s102
      %p104 = scmp.lt.s32.totalorder %s12, 1
      %s105 = scalar_select %p104, %s12, 1
      %s106 = smul.addr %s105, 4
      %s107 = scalar_lea.vmem %s0, %s106
      %p108 = scmp.lt.s32.totalorder %s12, 1
      %s109 = scalar_select %p108, %s12, 1
      %s110 = smul.addr %s109, 4
      %s111 = scalar_lea.vmem %s1, %s110
      %v113 = vlaneseq
      %v114 = vand.u32 %v113, 127
      %vm115 = vcmp.lt.s32.totalorder %v114, 5
      %v116 = vsel %vm115, 0.0, -1e+30
      %v117 = vld [vmem:[%s107] sm:$0xf]
      %v119 = vunpack.c.l.b16 %v117
      %v120 = vpack.c.b16 %v119, %v119
      %121 = vrot.lane.b32.xlu0 %v120, 96
      %v122 = vpop.permute.xlu0 %121
      %vm123 = vcmask 130048
      %v125 = vsel %vm123, %v117, 0
      %v128 = vsel %vm123, %v122, 0
      %130 = vmatpush.bf16.xpose.msra.mxu0 0
      %131 = vmatpush.bf16.xpose.msra.mxu0 0
      %132 = vmatpush.bf16.xpose.msra.mxu0 0
      %133 = vmatpush.bf16.xpose.msra.mxu0 0
      %134 = vmatpush.bf16.xpose.msra.mxu0 0
      %135 = vmatpush.bf16.xpose.msra.mxu0 0
      %136 = vmatpush.bf16.xpose.msra.mxu0 0
      %137 = vmatpush.bf16.xpose.msra.mxu0 %v128
      %138 = vmatmul.bf16.gmra.mxu0 %v125
      %v139 = vpop.f32.mrf.mxu0
      %v140 = vadd.f32 %v116, %v139
      %v141 = vpop.f32.mrf.mxu0
      %142 = vdwg.mxu0
      %vm143 = vcmask 64512
      %v144 = vsel %vm143, %v140, -inf
      %145 = vmax.xlane.f32.xlu0 %v144
      %v146 = vpop.xlane.xlu0 %145
      %v147 = vsub.f32 %v140, %v146
      %v148 = vmul.f32 %v147, 1.442695
      %v149 = vpow.pop %v148
      %v150 = vsel %vm143, %v149, 0.0
      %151 = vadd.xlane.f32.xlu0 %v150
      %v152 = vpop.xlane.xlu0 %151
      %v153 = vpack.c.bf16 %v149, %v149
      %154 = vrot.lane.b32.xlu0 %v120, 64
      %v155 = vpop.permute.xlu0 %154
      %v157 = vsel %vm143, %v153, 0
      %vm159 = vcmask 1043456
      %v161 = vsel %vm159, %v155, 0
      %163 = vmatpush.bf16.msra.mxu0 0
      %164 = vmatpush.bf16.msra.mxu0 0
      %165 = vmatpush.bf16.msra.mxu0 0
      %166 = vmatpush.bf16.msra.mxu0 0
      %167 = vmatpush.bf16.msra.mxu0 0
      %168 = vmatpush.bf16.msra.mxu0 0
      %169 = vmatpush.bf16.msra.mxu0 0
      %170 = vmatpush.bf16.msra.mxu0 %v161
      %171 = vmatmul.bf16.gmra.mxu0 %v157
      %v172 = vpop.f32.mrf.mxu0
      %v173 = vadd.f32 0.0, %v172
      %v174 = vpop.f32.mrf.mxu0
      %175 = vdwg.mxu0
      %v176 = vrcp.pop %v152
      %v177 = vmul.f32 %v173, %v176
      %178 = vrot.lane.b32.xlu0 %v120, 112
      %v179 = vpop.permute.xlu0 %178
      %180 = vrot.lane.b32.xlu0 %v120, 80
      %v181 = vpop.permute.xlu0 %180
      %v183 = vsel %vm123, %v179, 0
      %v186 = vsel %vm123, %v181, 0
      %188 = vmatpush.bf16.xpose.msra.mxu0 0
      %189 = vmatpush.bf16.xpose.msra.mxu0 0
      %190 = vmatpush.bf16.xpose.msra.mxu0 0
      %191 = vmatpush.bf16.xpose.msra.mxu0 0
      %192 = vmatpush.bf16.xpose.msra.mxu0 0
      %193 = vmatpush.bf16.xpose.msra.mxu0 0
      %194 = vmatpush.bf16.xpose.msra.mxu0 0
      %195 = vmatpush.bf16.xpose.msra.mxu0 %v186
      %196 = vmatmul.bf16.gmra.mxu0 %v183
      %v197 = vpop.f32.mrf.mxu0
      %v198 = vadd.f32 %v116, %v197
      %v199 = vpop.f32.mrf.mxu0
      %200 = vdwg.mxu0
      %v201 = vsel %vm143, %v198, -inf
      %202 = vmax.xlane.f32.xlu0 %v201
      %v203 = vpop.xlane.xlu0 %202
      %v204 = vsub.f32 %v198, %v203
      %v205 = vmul.f32 %v204, 1.442695
      %v206 = vpow.pop %v205
      %v207 = vsel %vm143, %v206, 0.0
      %208 = vadd.xlane.f32.xlu0 %v207
      %v209 = vpop.xlane.xlu0 %208
      %v210 = vpack.c.bf16 %v206, %v206
      %211 = vrot.lane.b32.xlu0 %v120, 48
      %v212 = vpop.permute.xlu0 %211
      %v214 = vsel %vm143, %v210, 0
      %v217 = vsel %vm159, %v212, 0
      %219 = vmatpush.bf16.msra.mxu0 0
      %220 = vmatpush.bf16.msra.mxu0 0
      %221 = vmatpush.bf16.msra.mxu0 0
      %222 = vmatpush.bf16.msra.mxu0 0
      %223 = vmatpush.bf16.msra.mxu0 0
      %224 = vmatpush.bf16.msra.mxu0 0
      %225 = vmatpush.bf16.msra.mxu0 0
      %226 = vmatpush.bf16.msra.mxu0 %v217
      %227 = vmatmul.bf16.gmra.mxu0 %v214
      %v228 = vpop.f32.mrf.mxu0
      %v229 = vadd.f32 0.0, %v228
      %v230 = vpop.f32.mrf.mxu0
      %231 = vdwg.mxu0
      %v232 = vrcp.pop %v209
      %v233 = vmul.f32 %v229, %v232
      %235 = vrot.lane.b32.xlu0 %v233, 16
      %v236 = vpop.permute.xlu0 %235
      %v238 = vsel %vm123, %v177, %v236
      %v239 = vpack.c.bf16 %v238, %v238
      %vm240 = vcmask 257024
      %241 = vst.msk [vmem:[%s111] sm:$0xf] %vm240, %v239
      %p242 = scmp.lt.s32.totalorder %s12, 1
      %s243 = scalar_select %p242, %s12, 1
      %s244 = smul.addr %s243, 4
      %s245 = scalar_lea.vmem %s1, %s244
      // Predicated region
      $region25: #{vit_b32_forward.14} parent=23 // pred_check
        %p246 = pneg %p56
      $region26: #{vit_b32_forward.14} parent=23 // pred_check_branch
        %248 = sbr.rel (%p246) target = $region28
      $region27: #{vit_b32_forward.14} parent=23 // pred_region
        _
      $region28: #{vit_b32_forward.14} parent=23 // pred_fallthru
        _
    $region24: #{vit_b32_forward.14} parent=5 // pred_fallthru
      _
    %p249 = scmp.le.s32.totalorder 2, %s7
    // Predicated region
    $region29: #{vit_b32_forward.14} parent=5 // pred_check
      %p250 = pneg %p249
    $region30: #{vit_b32_forward.14} parent=5 // pred_check_branch
      %252 = sbr.rel (%p250) target = $region32
    $region31: #{vit_b32_forward.14} parent=5 // pred_region
      %s253 = ssub.s32 %s7, 2
      // Predicated region
      $region33: #{vit_b32_forward.14} parent=31 // pred_check
        %p254 = pneg %p62
      $region34: #{vit_b32_forward.14} parent=31 // pred_check_branch
        %256 = sbr.rel (%p254) target = $region36
      $region35: #{vit_b32_forward.14} parent=31 // pred_region
        %p257 = scmp.lt.s32.totalorder %s13, 1
        %s258 = scalar_select %p257, %s13, 1
        %s259 = smul.addr %s258, 4
        %s260 = scalar_lea.vmem %s1, %s259
      $region36: #{vit_b32_forward.14} parent=31 // pred_fallthru
        _
    $region32: #{vit_b32_forward.14} parent=5 // pred_fallthru
      _
  $region6: #{vit_b32_forward.14} parent=0 // loop_footer
    %s11 = sadd.s32 1, %s7
  $region7: #{vit_b32_forward.14} parent=0 // loop_footer_branch
    %6 = sbr.rel target = $region3
  $region8: #{vit_b32_forward.14} parent=0 // loop_exit
    _

// kernel: vit_b32_forward.17
$region0: #{vit_b32_forward.17}
  #allocation0 [shape = 'u32[]', space=smem, size = 0x4, offset = 0x4, fixed_abs, tag = 'smem constant byte address 0x4 - core index']
  #allocation1 [shape = 'u32[72,128]{1,0:T(1,128)}', space=vmem, size = 0x9000, scoped, tag = 'internal scratch']
  %s0 = inlined_call_operand.vmem [shape: bf16[16,128], index: 0, kind: input, shape index: {}]
  %s1 = inlined_call_operand.vmem [shape: bf16[128,32], index: 1, kind: input, shape index: {}]
  %s2 = inlined_call_operand.vmem [shape: f32[1,32], index: 2, kind: input, shape index: {}]
  %s3 = inlined_call_operand.vmem [shape: f32[16,32], index: 3, kind: input, shape index: {}]
  %s4 = inlined_call_operand.vmem [shape: f32[16,32], index: 4, kind: output, shape index: {}]
  %s5 = sld [smem:[#allocation0]]
  $region26: #{vit_b32_forward.17} parent=0
    _
  %s7 = ssub.s32 1, %s5
  %s8 = scalar_select 0, %s7, %s5
  // Predicated region
  $region2: #{vit_b32_forward.17} parent=0 // pred_check
    _
  $region3: #{vit_b32_forward.17} parent=0 // pred_check_branch
    %10 = sbr.rel (0) target = $region5
  $region4: #{vit_b32_forward.17} parent=0 // pred_region
    _
  $region5: #{vit_b32_forward.17} parent=0 // pred_fallthru
    _
  // Predicated region
  $region6: #{vit_b32_forward.17} parent=0 // pred_check
    _
  $region7: #{vit_b32_forward.17} parent=0 // pred_check_branch
    %12 = sbr.rel (0) target = $region9
  $region8: #{vit_b32_forward.17} parent=0 // pred_region
    _
  $region9: #{vit_b32_forward.17} parent=0 // pred_fallthru
    _
  // Predicated region
  $region10: #{vit_b32_forward.17} parent=0 // pred_check
    _
  $region11: #{vit_b32_forward.17} parent=0 // pred_check_branch
    %14 = sbr.rel (0) target = $region13
  $region12: #{vit_b32_forward.17} parent=0 // pred_region
    _
  $region13: #{vit_b32_forward.17} parent=0 // pred_fallthru
    _
  // Predicated region
  $region14: #{vit_b32_forward.17} parent=0 // pred_check
    _
  $region15: #{vit_b32_forward.17} parent=0 // pred_check_branch
    %16 = sbr.rel (0) target = $region17
  $region16: #{vit_b32_forward.17} parent=0 // pred_region
    _
  $region17: #{vit_b32_forward.17} parent=0 // pred_fallthru
    _
  %v17 = vld [vmem:[%s0] sm:$0xf]
  %v18 = vld [vmem:[%s0 + $0x4] sm:$0xf]
  %v19 = vld [vmem:[%s1] sm:$0xf]
  %v20 = vld [vmem:[%s1 + $0x4] sm:$0xf]
  %v21 = vld [vmem:[%s1 + $0x8] sm:$0xf]
  %v22 = vld [vmem:[%s1 + $0xc] sm:$0xf]
  %v23 = vld [vmem:[%s1 + $0x10] sm:$0xf]
  %v24 = vld [vmem:[%s1 + $0x14] sm:$0xf]
  %v25 = vld [vmem:[%s1 + $0x18] sm:$0xf]
  %v26 = vld [vmem:[%s1 + $0x1c] sm:$0xf]
  %v27 = vld [vmem:[%s1 + $0x20] sm:$0xf]
  %v28 = vld [vmem:[%s1 + $0x24] sm:$0xf]
  %v29 = vld [vmem:[%s1 + $0x28] sm:$0xf]
  %v30 = vld [vmem:[%s1 + $0x2c] sm:$0xf]
  %v31 = vld [vmem:[%s1 + $0x30] sm:$0xf]
  %v32 = vld [vmem:[%s1 + $0x34] sm:$0xf]
  %v33 = vld [vmem:[%s1 + $0x38] sm:$0xf]
  %v34 = vld [vmem:[%s1 + $0x3c] sm:$0xf]
  %v35 = vld [vmem:[%s2] sm:$0x1]
  %v37 = vperm.slane %v35, 0
  %v41 = vunpack.c.l.b16 %v17
  %v42 = vunpack.c.l.b16 %v18
  %v43 = vpack.c.b16 %v42, %v41
  %v61 = vunpack.c.l.b16 %v19
  %v62 = vunpack.c.l.b16 %v20
  %v63 = vunpack.c.l.b16 %v21
  %v64 = vunpack.c.l.b16 %v22
  %v65 = vunpack.c.l.b16 %v23
  %v66 = vunpack.c.l.b16 %v24
  %v67 = vunpack.c.l.b16 %v25
  %v68 = vunpack.c.l.b16 %v26
  %v69 = vunpack.c.l.b16 %v27
  %v70 = vunpack.c.l.b16 %v28
  %v71 = vunpack.c.l.b16 %v29
  %v72 = vunpack.c.l.b16 %v30
  %v73 = vunpack.c.l.b16 %v31
  %v74 = vunpack.c.l.b16 %v32
  %v75 = vunpack.c.l.b16 %v33
  %v76 = vunpack.c.l.b16 %v34
  %v77 = vpack.c.b16 %v62, %v61
  %v78 = vpack.c.b16 %v64, %v63
  %v79 = vpack.c.b16 %v66, %v65
  %v80 = vpack.c.b16 %v68, %v67
  %v81 = vpack.c.b16 %v70, %v69
  %v82 = vpack.c.b16 %v72, %v71
  %v83 = vpack.c.b16 %v74, %v73
  %v84 = vpack.c.b16 %v76, %v75
  %93 = vmatpush.bf16.msra.mxu0 %v84
  %94 = vmatpush.bf16.msra.mxu0 %v83
  %95 = vmatpush.bf16.msra.mxu0 %v82
  %96 = vmatpush.bf16.msra.mxu0 %v81
  %97 = vmatpush.bf16.msra.mxu0 %v80
  %98 = vmatpush.bf16.msra.mxu0 %v79
  %99 = vmatpush.bf16.msra.mxu0 %v78
  %100 = vmatpush.bf16.msra.mxu0 %v77
  %101 = vmatmul.bf16.gmra.mxu0 %v43
  %v102 = vpop.f32.mrf.mxu0
  %v103 = vadd.f32 %v37, %v102
  %v104 = vpop.f32.mrf.mxu0
  %v105 = vadd.f32 %v37, %v104
  %106 = vdwg.mxu0
  %v107 = vld [vmem:[%s3] sm:$0xff]
  %v108 = vld [vmem:[%s3 + $0x8] sm:$0xff]
  %v109 = vadd.f32 %v103, %v107
  %v110 = vadd.f32 %v105, %v108
  %vm111 = vcmask 261120
  %112 = vst.msk [vmem:[%s4] sm:$0xff] %vm111, %v109
  %113 = vst.msk [vmem:[%s4 + $0x8] sm:$0xff] %vm111, %v110
  // Predicated region
  $region18: #{vit_b32_forward.17} parent=0 // pred_check
    _
  $region19: #{vit_b32_forward.17} parent=0 // pred_check_branch
    %115 = sbr.rel (0) target = $region21
  $region20: #{vit_b32_forward.17} parent=0 // pred_region
    _
  $region21: #{vit_b32_forward.17} parent=0 // pred_fallthru
    _
  // Predicated region
  $region22: #{vit_b32_forward.17} parent=0 // pred_check
    _
  $region23: #{vit_b32_forward.17} parent=0 // pred_check_branch
    %117 = sbr.rel (0) target = $region25
  $region24: #{vit_b32_forward.17} parent=0 // pred_region
    _
  $region25: #{vit_b32_forward.17} parent=0 // pred_fallthru
    _

// kernel: vit_b32_forward.16
$region0: #{vit_b32_forward.16}
  #allocation0 [shape = 'u32[]', space=smem, size = 0x4, offset = 0x4, fixed_abs, tag = 'smem constant byte address 0x4 - core index']
  #allocation1 [shape = 'u32[72,128]{1,0:T(1,128)}', space=vmem, size = 0x9000, scoped, tag = 'internal scratch']
  %s0 = inlined_call_operand.vmem [shape: f32[16,32], index: 0, kind: input, shape index: {}]
  %s1 = inlined_call_operand.vmem [shape: bf16[32,128], index: 1, kind: input, shape index: {}]
  %s2 = inlined_call_operand.vmem [shape: f32[1,128], index: 2, kind: input, shape index: {}]
  %s3 = inlined_call_operand.vmem [shape: f32[1,32], index: 3, kind: input, shape index: {}]
  %s4 = inlined_call_operand.vmem [shape: f32[1,32], index: 4, kind: input, shape index: {}]
  %s5 = inlined_call_operand.vmem [shape: bf16[16,128], index: 5, kind: output, shape index: {}]
  %s6 = sld [smem:[#allocation0]]
  $region30: #{vit_b32_forward.16} parent=0
    _
  %s8 = ssub.s32 1, %s6
  %s9 = scalar_select 0, %s8, %s6
  // Predicated region
  $region2: #{vit_b32_forward.16} parent=0 // pred_check
    _
  $region3: #{vit_b32_forward.16} parent=0 // pred_check_branch
    %11 = sbr.rel (0) target = $region5
  $region4: #{vit_b32_forward.16} parent=0 // pred_region
    _
  $region5: #{vit_b32_forward.16} parent=0 // pred_fallthru
    _
  // Predicated region
  $region6: #{vit_b32_forward.16} parent=0 // pred_check
    _
  $region7: #{vit_b32_forward.16} parent=0 // pred_check_branch
    %13 = sbr.rel (0) target = $region9
  $region8: #{vit_b32_forward.16} parent=0 // pred_region
    _
  $region9: #{vit_b32_forward.16} parent=0 // pred_fallthru
    _
  // Predicated region
  $region10: #{vit_b32_forward.16} parent=0 // pred_check
    _
  $region11: #{vit_b32_forward.16} parent=0 // pred_check_branch
    %15 = sbr.rel (0) target = $region13
  $region12: #{vit_b32_forward.16} parent=0 // pred_region
    _
  $region13: #{vit_b32_forward.16} parent=0 // pred_fallthru
    _
  // Predicated region
  $region14: #{vit_b32_forward.16} parent=0 // pred_check
    _
  $region15: #{vit_b32_forward.16} parent=0 // pred_check_branch
    %17 = sbr.rel (0) target = $region17
  $region16: #{vit_b32_forward.16} parent=0 // pred_region
    _
  $region17: #{vit_b32_forward.16} parent=0 // pred_fallthru
    _
  // Predicated region
  $region18: #{vit_b32_forward.16} parent=0 // pred_check
    _
  $region19: #{vit_b32_forward.16} parent=0 // pred_check_branch
    %19 = sbr.rel (0) target = $region21
  $region20: #{vit_b32_forward.16} parent=0 // pred_region
    _
  $region21: #{vit_b32_forward.16} parent=0 // pred_fallthru
    _
  %v21 = vld [vmem:[%s0] sm:$0xff]
  %v22 = vld [vmem:[%s0 + $0x8] sm:$0xff]
  %vm23 = vcmask 261120
  %v24 = vsel %vm23, %v21, 0.0
  %25 = vadd.xlane.f32.xlu0 %v24
  %v26 = vpop.xlane.xlu0 %25
  %v27 = vsel %vm23, %v22, 0.0
  %28 = vadd.xlane.f32.xlu0 %v27
  %v29 = vpop.xlane.xlu0 %28
  %v30 = vrcp.pop 32.0
  %v31 = vmul.f32 32.0, %v30
  %v32 = vsub.f32 1.0, %v31
  %v33 = vmul.f32 %v30, %v32
  %v34 = vadd.f32 %v30, %v33
  %vm35 = vweird.f32 %v30
  %v36 = vsel %vm35, %v30, %v34
  %v37 = vmul.f32 %v26, %v36
  %v38 = vmul.f32 %v29, %v36
  %v39 = vsub.f32 %v21, %v37
  %v40 = vsub.f32 %v22, %v38
  %v41 = vmul.f32 %v39, %v39
  %v42 = vmul.f32 %v40, %v40
  %v43 = vsel %vm23, %v41, 0.0
  %44 = vadd.xlane.f32.xlu0 %v43
  %v45 = vpop.xlane.xlu0 %44
  %v46 = vsel %vm23, %v42, 0.0
  %47 = vadd.xlane.f32.xlu0 %v46
  %v48 = vpop.xlane.xlu0 %47
  %v49 = vmul.f32 %v45, %v36
  %v50 = vmul.f32 %v48, %v36
  %v51 = vadd.f32 %v49, 1e-05
  %v52 = vadd.f32 %v50, 1e-05
  %v53 = vrsqrt.pop %v51
  %v54 = vmul.f32 %v53, %v51
  %v55 = vmul.f32 %v54, %v53
  %v56 = vmul.f32 0.5, %v55
  %v57 = vsub.f32 1.5, %v56
  %v58 = vmul.f32 %v53, %v57
  %vm59 = vweird.f32 %v51
  %vm60 = vweird.f32 %v53
  %vm61 = vmor %vm59, %vm60
  %v62 = vsel %vm61, %v53, %v58
  %v63 = vrsqrt.pop %v52
  %v64 = vmul.f32 %v63, %v52
  %v65 = vmul.f32 %v64, %v63
  %v66 = vmul.f32 0.5, %v65
  %v67 = vsub.f32 1.5, %v66
  %v68 = vmul.f32 %v63, %v67
  %vm69 = vweird.f32 %v52
  %vm70 = vweird.f32 %v63
  %vm71 = vmor %vm69, %vm70
  %v72 = vsel %vm71, %v63, %v68
  %v73 = vmul.f32 %v39, %v62
  %v74 = vmul.f32 %v40, %v72
  %v75 = vld [vmem:[%s3] sm:$0x1]
  %v77 = vperm.slane %v75, 0
  %v79 = vmul.f32 %v73, %v77
  %v80 = vmul.f32 %v74, %v77
  %v81 = vld [vmem:[%s4] sm:$0x1]
  %v83 = vperm.slane %v81, 0
  %v85 = vadd.f32 %v79, %v83
  %v86 = vadd.f32 %v80, %v83
  %v87 = vpack.c.bf16 %v86, %v85
  %v88 = vld [vmem:[%s1] sm:$0xf]
  %v89 = vld [vmem:[%s1 + $0x4] sm:$0xf]
  %v90 = vld [vmem:[%s1 + $0x8] sm:$0xf]
  %v91 = vld [vmem:[%s1 + $0xc] sm:$0xf]
  %v92 = vld [vmem:[%s2] sm:$0x1]
  %v94 = vperm.slane %v92, 0
  %v100 = vunpack.c.l.b16 %v88
  %v101 = vunpack.c.l.b16 %v89
  %v102 = vunpack.c.l.b16 %v90
  %v103 = vunpack.c.l.b16 %v91
  %v104 = vpack.c.b16 %v101, %v100
  %v105 = vpack.c.b16 %v103, %v102
  %v109 = vsel %vm23, %v87, 0
  %111 = vmatpush.bf16.msra.mxu0 0
  %112 = vmatpush.bf16.msra.mxu0 0
  %113 = vmatpush.bf16.msra.mxu0 0
  %114 = vmatpush.bf16.msra.mxu0 0
  %115 = vmatpush.bf16.msra.mxu0 0
  %116 = vmatpush.bf16.msra.mxu0 0
  %117 = vmatpush.bf16.msra.mxu0 %v105
  %118 = vmatpush.bf16.msra.mxu0 %v104
  %119 = vmatmul.bf16.gmra.mxu0 %v109
  %v120 = vpop.f32.mrf.mxu0
  %v121 = vadd.f32 %v94, %v120
  %v122 = vpop.f32.mrf.mxu0
  %v123 = vadd.f32 %v94, %v122
  %124 = vdwg.mxu0
  %v125 = vmul.f32 %v121, 0.5
  %v126 = vmul.f32 %v123, 0.5
  %v127 = vmul.f32 %v121, 0.70710677
  %v128 = vmul.f32 %v123, 0.70710677
  %v129 = vmul.f32 %v127, %v127
  %v130 = vmin.f32 16.0, %v129
  %v131 = vmul.f32 %v130, 2.1237322e-06
  %v132 = vadd.f32 %v131, 0.00028619796
  %v133 = vmul.f32 %v130, %v132
  %v134 = vadd.f32 %v133, 0.0036580483
  %v135 = vmul.f32 %v130, %v134
  %v136 = vadd.f32 %v135, 0.05243302
  %v137 = vmul.f32 %v130, %v136
  %v138 = vadd.f32 %v137, 0.18741608
  %v139 = vmul.f32 %v130, %v138
  %v140 = vadd.f32 %v139, 1.1283791
  %v141 = vmul.f32 %v127, %v140
  %v142 = vmul.f32 %v130, 3.8918573e-05
  %v143 = vadd.f32 %v142, 0.001143296
  %v144 = vmul.f32 %v130, %v143
  %v145 = vadd.f32 %v144, 0.014752088
  %v146 = vmul.f32 %v130, %v145
  %v147 = vadd.f32 %v146, 0.112945676
  %v148 = vmul.f32 %v130, %v147
  %v149 = vadd.f32 %v148, 0.4994258
  %v150 = vmul.f32 %v130, %v149
  %v151 = vadd.f32 %v150, 1.0
  %v152 = vrcp.pop %v151
  %v153 = vmul.f32 %v151, %v152
  %v154 = vsub.f32 1.0, %v153
  %v155 = vmul.f32 %v152, %v154
  %v156 = vadd.f32 %v152, %v155
  %vm157 = vweird.f32 %v151
  %vm158 = vweird.f32 %v152
  %vm159 = vmor %vm157, %vm158
  %v160 = vsel %vm159, %v152, %v156
  %v161 = vand.u32 2147483647, %v151
  %vm162 = vcmp.eq.f32.partialorder %v161, 8.507059e+37
  %v163 = vand.u32 %v151, 2147483648
  %v164 = vor.u32 1.1754944e-38, %v163
  %v165 = vsel %vm162, %v164, %v160
  %v166 = vmul.f32 %v141, %v165
  %v167 = vmin.f32 %v166, 1.0
  %v168 = vmax.f32 %v167, -1.0
  %v169 = vmul.f32 %v128, %v128
  %v170 = vmin.f32 16.0, %v169
  %v171 = vmul.f32 %v170, 2.1237322e-06
  %v172 = vadd.f32 %v171, 0.00028619796
  %v173 = vmul.f32 %v170, %v172
  %v174 = vadd.f32 %v173, 0.0036580483
  %v175 = vmul.f32 %v170, %v174
  %v176 = vadd.f32 %v175, 0.05243302
  %v177 = vmul.f32 %v170, %v176
  %v178 = vadd.f32 %v177, 0.18741608
  %v179 = vmul.f32 %v170, %v178
  %v180 = vadd.f32 %v179, 1.1283791
  %v181 = vmul.f32 %v128, %v180
  %v182 = vmul.f32 %v170, 3.8918573e-05
  %v183 = vadd.f32 %v182, 0.001143296
  %v184 = vmul.f32 %v170, %v183
  %v185 = vadd.f32 %v184, 0.014752088
  %v186 = vmul.f32 %v170, %v185
  %v187 = vadd.f32 %v186, 0.112945676
  %v188 = vmul.f32 %v170, %v187
  %v189 = vadd.f32 %v188, 0.4994258
  %v190 = vmul.f32 %v170, %v189
  %v191 = vadd.f32 %v190, 1.0
  %v192 = vrcp.pop %v191
  %v193 = vmul.f32 %v191, %v192
  %v194 = vsub.f32 1.0, %v193
  %v195 = vmul.f32 %v192, %v194
  %v196 = vadd.f32 %v192, %v195
  %vm197 = vweird.f32 %v191
  %vm198 = vweird.f32 %v192
  %vm199 = vmor %vm197, %vm198
  %v200 = vsel %vm199, %v192, %v196
  %v201 = vand.u32 2147483647, %v191
  %vm202 = vcmp.eq.f32.partialorder %v201, 8.507059e+37
  %v203 = vand.u32 %v191, 2147483648
  %v204 = vor.u32 1.1754944e-38, %v203
  %v205 = vsel %vm202, %v204, %v200
  %v206 = vmul.f32 %v181, %v205
  %v207 = vmin.f32 %v206, 1.0
  %v208 = vmax.f32 %v207, -1.0
  %v209 = vadd.f32 %v168, 1.0
  %v210 = vadd.f32 %v208, 1.0
  %v211 = vmul.f32 %v125, %v209
  %v212 = vmul.f32 %v126, %v210
  %v213 = vpack.c.bf16 %v211, %v211
  %v214 = vpack.c.bf16 %v212, %v212
  %215 = vst [vmem:[%s5] sm:$0xf] %v213
  %216 = vst [vmem:[%s5 + $0x4] sm:$0xf] %v214
  // Predicated region
  $region22: #{vit_b32_forward.16} parent=0 // pred_check
    _
  $region23: #{vit_b32_forward.16} parent=0 // pred_check_branch
    %218 = sbr.rel (0) target = $region25
  $region24: #{vit_b32_forward.16} parent=0 // pred_region
    _
  $region25: #{vit_b32_forward.16} parent=0 // pred_fallthru
    _
  // Predicated region
  $region26: #{vit_b32_forward.16} parent=0 // pred_check
    _
  $region27: #{vit_b32_forward.16} parent=0 // pred_check_branch
    %220 = sbr.rel (0) target = $region29
  $region28: #{vit_b32_forward.16} parent=0 // pred_region
    _
  $region29: #{vit_b32_forward.16} parent=0 // pred_fallthru
    _

// kernel: vit_b32_forward.23
$region0: #{vit_b32_forward.23}
  #allocation0 [shape = 'u32[]', space=smem, size = 0x4, offset = 0x4, fixed_abs, tag = 'smem constant byte address 0x4 - core index']
  #allocation1 [shape = 'u32[72,128]{1,0:T(1,128)}', space=vmem, size = 0x9000, scoped, tag = 'internal scratch']
  %s0 = inlined_call_operand.vmem [shape: f32[2,32], index: 0, kind: input, shape index: {}]
  %s1 = inlined_call_operand.vmem [shape: f32[1,32], index: 1, kind: input, shape index: {}]
  %s2 = inlined_call_operand.vmem [shape: f32[1,32], index: 2, kind: input, shape index: {}]
  %s3 = inlined_call_operand.hbm [shape: f32[2,32], index: 3, kind: output, shape index: {}]
  %s4 = sld [smem:[#allocation0]]
  $region22: #{vit_b32_forward.23} parent=0
    _
  %s6 = ssub.s32 1, %s4
  %s7 = scalar_select 0, %s6, %s4
  $region1: #{vit_b32_forward.23} parent=0
    #allocation2 [shape = 'u8[1024]{0}', space=vmem, size = 0x400, scoped, tag = 'output window, operand 0, single buffered']
    #allocation3 [shape = 's32[1]{0}', space=sflag, size = 0x4, scoped, tag = 'scoped memory for vit_b32_forward.23']
    %8 = vsyncpa [#allocation3], 0
    // Predicated region
    $region2: #{vit_b32_forward.23} parent=1 // pred_check
      _
    $region3: #{vit_b32_forward.23} parent=1 // pred_check_branch
      %10 = sbr.rel (0) target = $region5
    $region4: #{vit_b32_forward.23} parent=1 // pred_region
      _
    $region5: #{vit_b32_forward.23} parent=1 // pred_fallthru
      _
    // Predicated region
    $region6: #{vit_b32_forward.23} parent=1 // pred_check
      _
    $region7: #{vit_b32_forward.23} parent=1 // pred_check_branch
      %12 = sbr.rel (0) target = $region9
    $region8: #{vit_b32_forward.23} parent=1 // pred_region
      _
    $region9: #{vit_b32_forward.23} parent=1 // pred_fallthru
      _
    // Predicated region
    $region10: #{vit_b32_forward.23} parent=1 // pred_check
      _
    $region11: #{vit_b32_forward.23} parent=1 // pred_check_branch
      %14 = sbr.rel (0) target = $region13
    $region12: #{vit_b32_forward.23} parent=1 // pred_region
      _
    $region13: #{vit_b32_forward.23} parent=1 // pred_fallthru
      _
    %v15 = vld [vmem:[%s0] sm:$0x3]
    %vm16 = vcmask 254976
    %v17 = vsel %vm16, %v15, 0.0
    %18 = vadd.xlane.f32.xlu0 %v17
    %v19 = vpop.xlane.xlu0 %18
    %v20 = vrcp.pop 32.0
    %v21 = vmul.f32 32.0, %v20
    %v22 = vsub.f32 1.0, %v21
    %v23 = vmul.f32 %v20, %v22
    %v24 = vadd.f32 %v20, %v23
    %vm25 = vweird.f32 %v20
    %v26 = vsel %vm25, %v20, %v24
    %v27 = vmul.f32 %v19, %v26
    %v28 = vsub.f32 %v15, %v27
    %v29 = vmul.f32 %v28, %v28
    %v30 = vsel %vm16, %v29, 0.0
    %31 = vadd.xlane.f32.xlu0 %v30
    %v32 = vpop.xlane.xlu0 %31
    %v33 = vmul.f32 %v32, %v26
    %v34 = vadd.f32 %v33, 1e-05
    %v35 = vrsqrt.pop %v34
    %v36 = vmul.f32 %v35, %v34
    %v37 = vmul.f32 %v36, %v35
    %v38 = vmul.f32 0.5, %v37
    %v39 = vsub.f32 1.5, %v38
    %v40 = vmul.f32 %v35, %v39
    %vm41 = vweird.f32 %v34
    %vm42 = vweird.f32 %v35
    %vm43 = vmor %vm41, %vm42
    %v44 = vsel %vm43, %v35, %v40
    %v45 = vmul.f32 %v28, %v44
    %v46 = vld [vmem:[%s1] sm:$0x1]
    %v48 = vperm.slane %v46, 0
    %v50 = vmul.f32 %v45, %v48
    %v51 = vld [vmem:[%s2] sm:$0x1]
    %v53 = vperm.slane %v51, 0
    %v55 = vadd.f32 %v50, %v53
    %56 = vst.msk [vmem:[#allocation2] sm:$0x3] %vm16, %v55
    // Predicated region
    $region14: #{vit_b32_forward.23} parent=1 // pred_check
      _
    $region15: #{vit_b32_forward.23} parent=1 // pred_check_branch
      %58 = sbr.rel (0) target = $region17
    $region16: #{vit_b32_forward.23} parent=1 // pred_region
      %60 = vsyncadd [#allocation3], 0
      %s62 = sshll.u32 [#allocation2], 4
      %s63 = int_to_ptr.vmem [resolvable:$true] %s62
      %s64 = sshll.u32 %s3, 4
      %s65 = int_to_ptr.hbm [resolvable:$true] %s64
      %67 = dma.vmem_to_hbm [thread:$0]  %s63, 32, %s65, [#allocation3]
    $region17: #{vit_b32_forward.23} parent=1 // pred_fallthru
      _
    // Predicated region
    $region18: #{vit_b32_forward.23} parent=1 // pred_check
      _
    $region19: #{vit_b32_forward.23} parent=1 // pred_check_branch
      %69 = sbr.rel (0) target = $region21
    $region20: #{vit_b32_forward.23} parent=1 // pred_region
      %71 = dma.done [#allocation3], 32
    $region21: #{vit_b32_forward.23} parent=1 // pred_fallthru
      _
    %72 = vsyncpa [#allocation3], 1

</llo_original>
